<compile_context>
chip_gen: v7x
topology: tpu7x:2x2x1
jax: 0.10.0
libtpu: 0.0.40
codegen_flags: <defaults>
</compile_context>

<pallas_src>
import functools

import jax
import jax.numpy as jnp
from jax.experimental import pallas as pl
from jax.experimental.pallas import tpu as pltpu

NUM_NODES = 4
NUM_OPS = 5                      # none, skip_connect, conv_1x1, conv_3x3, avg_pool_3x3
INV_OPS = 1.0 / NUM_OPS
# edges grouped by source node; this ordering defines the weight-row layout
EDGES = [(0, 1), (0, 2), (0, 3), (1, 2), (1, 3), (2, 3)]


# ----------------------------------------------------------------------------
# Fused cell kernel: one grid step == one batch element, all 6 edges computed.
# ----------------------------------------------------------------------------
def _cell_kernel(x_ref, w_ref, b_ref, recip_ref, ml_ref, mr_ref, o_ref,
                 pad_ref, patch_ref, *, C, H, W, PAD):
    HW = H * W
    recip = recip_ref[...]          # (1, HW)  0.2 / pool_count (no-pad counts)
    mask_l = ml_ref[...]            # (1, HW)  1.0 where x >= 1     (tap dx = -1)
    mask_r = mr_ref[...]            # (1, HW)  1.0 where x <= W - 2 (tap dx = +1)

    # Zero the padded scratch once: halo regions are never written again and
    # the data region is fully overwritten for every source node.
    pad_ref[...] = jnp.zeros_like(pad_ref)

    def node_edges(node, col0, deg):
        """node: (C, HW) source-node feature.

        Returns (base, y):
          base : (C, HW)      shared skip(x)/5 + avg_pool/5 term (identical for
                              every outgoing edge of this node)
          y    : (deg*C, HW)  stacked ReLU->conv->BN outputs (already /5) of all
                              `deg` outgoing edges, via one matmul.
        """
        pad_ref[:, PAD:PAD + HW] = node           # lane-aligned store
        pool = None
        for k in range(9):                        # 3x3 taps, k = ky*3 + kx
            dy, dx = k // 3 - 1, k % 3 - 1
            start = PAD + dy * W + dx
            s = pad_ref[:, start:start + HW]      # (C, HW); zero halo covers dy
            if dx == -1:
                s = s * mask_l                    # kill row wrap-around
            elif dx == 1:
                s = s * mask_r
            pool = s if pool is None else pool + s
            # relu(0) == 0, so masked / padded zeros survive the ReLU unchanged
            patch_ref[k * C:(k + 1) * C, :] = jnp.maximum(s, 0.0)
        base = INV_OPS * node + pool * recip      # skip + avg-pool terms
        y = jnp.dot(w_ref[col0:col0 + deg * C, :], patch_ref[...],
                    preferred_element_type=jnp.float32)
        y = y + b_ref[col0:col0 + deg * C, :]
        return base, y

    x0 = x_ref[0].astype(jnp.float32)             # (C, HW)

    # node 0 -> edges (0,1), (0,2), (0,3)   [weight rows 0 : 3C]
    base0, y0 = node_edges(x0, 0, 3)
    e01 = base0 + y0[0:C, :]
    e02 = base0 + y0[C:2 * C, :]
    e03 = base0 + y0[2 * C:3 * C, :]

    # node 1 -> edges (1,2), (1,3)          [weight rows 3C : 5C]
    base1, y1 = node_edges(e01, 3 * C, 2)
    e12 = base1 + y1[0:C, :]
    e13 = base1 + y1[C:2 * C, :]

    # node 2 -> edge (2,3)                  [weight rows 5C : 6C]
    base2, y2 = node_edges(e02 + e12, 5 * C, 1)
    e23 = base2 + y2[0:C, :]

    o_ref[0] = (e03 + e13 + e23).astype(o_ref.dtype)


# ----------------------------------------------------------------------------
# Cell forward (PyTorch-facing: NCHW in / NCHW out)
# ----------------------------------------------------------------------------
@jax.jit
def cell_forward(x_nchw, w_t, b_col, recip, mask_l, mask_r):
    B, C, H, W = x_nchw.shape
    HW = H * W
    PAD = max(int(pl.cdiv(W + 1, 128)) * 128, 128)   # lane-aligned halo >= W+1
    x_flat = x_nchw.reshape(B, C, HW)                # free (no transpose)
    kernel = functools.partial(_cell_kernel, C=C, H=H, W=W, PAD=PAD)
    out = pl.pallas_call(
        kernel,
        out_shape=jax.ShapeDtypeStruct((B, C, HW), x_nchw.dtype),
        grid_spec=pltpu.PrefetchScalarGridSpec(
            num_scalar_prefetch=0,
            grid=(B,),
            in_specs=[
                pl.BlockSpec((1, C, HW), lambda b: (b, 0, 0)),     # x (lane-dense)
                pl.BlockSpec((6 * C, 9 * C), lambda b: (0, 0)),    # folded W^T
                pl.BlockSpec((6 * C, 1), lambda b: (0, 0)),        # folded bias
                pl.BlockSpec((1, HW), lambda b: (0, 0)),           # pool recip
                pl.BlockSpec((1, HW), lambda b: (0, 0)),           # mask dx = -1
                pl.BlockSpec((1, HW), lambda b: (0, 0)),           # mask dx = +1
            ],
            out_specs=pl.BlockSpec((1, C, HW), lambda b: (b, 0, 0)),
            scratch_shapes=[
                pltpu.VMEM((C, PAD + HW + PAD), jnp.float32),      # padded node
                pltpu.VMEM((9 * C, HW), jnp.float32),              # shifted taps
            ],
        ),
        compiler_params=pltpu.CompilerParams(
            dimension_semantics=("parallel",)),
    )(x_flat, w_t, b_col, recip, mask_l, mask_r)
    return out.reshape(B, C, H, W)


# ----------------------------------------------------------------------------
# Parameter construction: raw torch-style params + host-side folding
# ----------------------------------------------------------------------------
def _init_edge_raw(key, C):
    eps = 1e-5
    ks = jax.random.split(key, 4)
    w1 = 0.1 * jax.random.normal(ks[0], (C, C, 1, 1), jnp.float32)   # OIHW
    w3 = 0.1 * jax.random.normal(ks[1], (C, C, 3, 3), jnp.float32)   # OIHW

    def bn(k):
        kk = jax.random.split(k, 4)
        gamma = 1.0 + 0.1 * jax.random.normal(kk[0], (C,), jnp.float32)
        beta = 0.1 * jax.random.normal(kk[1], (C,), jnp.float32)
        mean = 0.05 * jax.random.normal(kk[2], (C,), jnp.float32)
        var = 1.0 + jnp.abs(0.1 * jax.random.normal(kk[3], (C,), jnp.float32))
        scale = gamma / jnp.sqrt(var + eps)
        shift = beta - mean * scale
        return scale, shift

    s1, b1 = bn(ks[2])
    s3, b3 = bn(ks[3])
    return dict(w1=w1, w3=w3, s1=s1, b1=b1, s3=s3, b3=b3)


def init_cell_raw_params(key, C):
    params = {}
    for (j, i) in EDGES:
        key, sub = jax.random.split(key)
        params[f"{j}_{i}"] = _init_edge_raw(sub, C)
    return params


def fold_cell_params(raw, C):
    """Fold BN (eval) + 1/5 mean into conv weights; fold the 1x1 conv into the
    3x3 center tap.  Returns W^T of shape (6C, 9C) with edge rows in EDGES
    order (row = edge*C + c_out) and tap columns ordered k*C + c_in,
    k = ky*3 + kx, plus bias (6C, 1)."""
    w_cols, b_cols = [], []
    for (j, i) in EDGES:
        p = raw[f"{j}_{i}"]
        w3f = p["w3"] * (INV_OPS * p["s3"])[:, None, None, None]   # (Co,Ci,ky,kx)
        wk = jnp.transpose(w3f, (2, 3, 1, 0)).reshape(9, C, C)      # (k, Ci, Co)
        w1f = (INV_OPS * p["s1"])[None, :] * p["w1"][:, :, 0, 0].T  # (Ci, Co)
        wk = wk.at[4].add(w1f)                                      # center tap
        w_cols.append(wk.reshape(9 * C, C))
        b_cols.append((INV_OPS * (p["b1"] + p["b3"])).reshape(1, C))
    w_all = jnp.concatenate(w_cols, axis=1)                         # (9C, 6C)
    b_all = jnp.concatenate(b_cols, axis=1)                         # (1, 6C)
    return w_all.T, b_all.T                                         # (6C,9C),(6C,1)


def make_pool_recip(H, W):
    """(1, HW) map of (1/NUM_OPS) / valid_count for avg_pool_3x3 with stride 1,
    padding 1, count_include_pad=False."""
    hh = jnp.arange(H)
    ww = jnp.arange(W)
    ch = 3.0 - (hh == 0).astype(jnp.float32) - (hh == H - 1).astype(jnp.float32)
    cw = 3.0 - (ww == 0).astype(jnp.float32) - (ww == W - 1).astype(jnp.float32)
    cnt = ch[:, None] * cw[None, :]
    return (INV_OPS / cnt).reshape(1, H * W).astype(jnp.float32)


def make_edge_masks(H, W):
    """(1, HW) masks killing the left/right row wrap-around of the flattened
    spatial shift (dx = -1 and dx = +1 taps respectively)."""
    ix = jnp.arange(H * W) % W
    ml = (ix >= 1).astype(jnp.float32).reshape(1, H * W)
    mr = (ix <= W - 2).astype(jnp.float32).reshape(1, H * W)
    return ml, mr


# ----------------------------------------------------------------------------
# Pure-JAX reference (unfolded math) for the correctness check
# ----------------------------------------------------------------------------
def _edge_ref(x, p):  # x: NCHW
    xr = jax.nn.relu(x)
    dn = ("NCHW", "OIHW", "NCHW")
    y1 = jax.lax.conv_general_dilated(xr, p["w1"], (1, 1), "SAME",
                                      dimension_numbers=dn)
    y1 = y1 * p["s1"][None, :, None, None] + p["b1"][None, :, None, None]
    y3 = jax.lax.conv_general_dilated(xr, p["w3"], (1, 1), "SAME",
                                      dimension_numbers=dn)
    y3 = y3 * p["s3"][None, :, None, None] + p["b3"][None, :, None, None]
    s = jax.lax.reduce_window(x, 0.0, jax.lax.add,
                              (1, 1, 3, 3), (1, 1, 1, 1), "SAME")
    c = jax.lax.reduce_window(jnp.ones_like(x), 0.0, jax.lax.add,
                              (1, 1, 3, 3), (1, 1, 1, 1), "SAME")
    pool = s / c
    return (x + y1 + y3 + pool) / NUM_OPS


def cell_ref(x, raw):
    nodes = [x]
    for i in range(1, NUM_NODES):
        nodes.append(sum(_edge_ref(nodes[j], raw[f"{j}_{i}"]) for j in range(i)))
    return nodes[-1]


# ----------------------------------------------------------------------------
if __name__ == "__main__":
    key = jax.random.PRNGKey(0)
    k_x, k_p = jax.random.split(key)

    B, C, H, W = 2, 8, 16, 16      # small NCHW input, C_in == C_out, stride == 1
    x = jax.random.normal(k_x, (B, C, H, W), jnp.float32)

    raw = init_cell_raw_params(k_p, C)
    w_t, b_col = fold_cell_params(raw, C)
    recip = make_pool_recip(H, W)
    mask_l, mask_r = make_edge_masks(H, W)

    out = jax.block_until_ready(cell_forward(x, w_t, b_col, recip, mask_l, mask_r))
    assert out.shape == (B, C, H, W), out.shape

    ref = jax.block_until_ready(cell_ref(x, raw))
    max_err = float(jnp.max(jnp.abs(out - ref)))
    assert jnp.allclose(out, ref, atol=2e-4, rtol=2e-4), max_err

    print("KERNEL_OK")
</pallas_src>

<mosaic_0001>
module attributes {stable_mosaic.version = 11 : i64} {
  func.func @_cell_kernel(%arg0: i32, %arg1: memref<1x8x256xf32, #tpu.memory_space<vmem>>, %arg2: memref<48x72xf32, #tpu.memory_space<vmem>>, %arg3: memref<48x1xf32, #tpu.memory_space<vmem>>, %arg4: memref<1x256xf32, #tpu.memory_space<vmem>>, %arg5: memref<1x256xf32, #tpu.memory_space<vmem>>, %arg6: memref<1x256xf32, #tpu.memory_space<vmem>>, %arg7: memref<1x8x256xf32, #tpu.memory_space<vmem>>, %arg8: memref<8x512xf32, #tpu.memory_space<vmem>>, %arg9: memref<72x256xf32, #tpu.memory_space<vmem>>) attributes {dimension_semantics = [#tpu.dimension_semantics<parallel>], iteration_bounds = array<i64: 2>, scalar_prefetch = 0 : i64, scratch_operands = 2 : i64, tpu.core_type = #tpu.core_type<tc>, window_params = [{transform_indices = @transform_0, window_bounds = array<i64: 1, 8, 256>}, {pipeline_mode = #tpu.pipeline_mode<synchronous>, transform_indices = @transform_1, window_bounds = array<i64: 48, 72>}, {pipeline_mode = #tpu.pipeline_mode<synchronous>, transform_indices = @transform_2, window_bounds = array<i64: 48, 1>}, {pipeline_mode = #tpu.pipeline_mode<synchronous>, transform_indices = @transform_3, window_bounds = array<i64: 1, 256>}, {pipeline_mode = #tpu.pipeline_mode<synchronous>, transform_indices = @transform_4, window_bounds = array<i64: 1, 256>}, {pipeline_mode = #tpu.pipeline_mode<synchronous>, transform_indices = @transform_5, window_bounds = array<i64: 1, 256>}, {transform_indices = @transform_6, window_bounds = array<i64: 1, 8, 256>}]} {
    %c0 = arith.constant 0 : index
    %c0_0 = arith.constant 0 : index
    %0 = vector.load %arg4[%c0, %c0_0] : memref<1x256xf32, #tpu.memory_space<vmem>>, vector<1x256xf32>
    %c0_1 = arith.constant 0 : index
    %c0_2 = arith.constant 0 : index
    %1 = vector.load %arg5[%c0_1, %c0_2] : memref<1x256xf32, #tpu.memory_space<vmem>>, vector<1x256xf32>
    %c0_3 = arith.constant 0 : index
    %c0_4 = arith.constant 0 : index
    %2 = vector.load %arg6[%c0_3, %c0_4] : memref<1x256xf32, #tpu.memory_space<vmem>>, vector<1x256xf32>
    %cst = arith.constant 0.000000e+00 : f32
    %3 = vector.broadcast %cst : f32 to vector<8x512xf32>
    %c0_5 = arith.constant 0 : index
    %c0_6 = arith.constant 0 : index
    %4 = vector.load %arg8[%c0_5, %c0_6] : memref<8x512xf32, #tpu.memory_space<vmem>>, vector<8x512xf32>
    tpu.vector_store %arg8[%c0_5, %c0_6], %3 {strides = array<i32>} : memref<8x512xf32, #tpu.memory_space<vmem>>, vector<8x512xf32>,
    %c0_7 = arith.constant 0 : index
    %c0_8 = arith.constant 0 : index
    %c0_9 = arith.constant 0 : index
    %5 = vector.load %arg1[%c0_7, %c0_8, %c0_9] : memref<1x8x256xf32, #tpu.memory_space<vmem>>, vector<1x8x256xf32>
    %6 = vector.shape_cast %5 : vector<1x8x256xf32> to vector<8x256xf32>
    %c0_10 = arith.constant 0 : index
    %c128 = arith.constant 128 : index
    %7 = vector.load %arg8[%c0_10, %c128] : memref<8x512xf32, #tpu.memory_space<vmem>>, vector<8x256xf32>
    tpu.vector_store %arg8[%c0_10, %c128], %6 {strides = array<i32>} : memref<8x512xf32, #tpu.memory_space<vmem>>, vector<8x256xf32>,
    %c0_11 = arith.constant 0 : index
    %c111 = arith.constant 111 : index
    %8 = vector.load %arg8[%c0_11, %c111] : memref<8x512xf32, #tpu.memory_space<vmem>>, vector<8x256xf32>
    %9 = vector.broadcast %1 : vector<1x256xf32> to vector<8x256xf32>
    %10 = arith.mulf %8, %9 : vector<8x256xf32>
    %cst_12 = arith.constant 0.000000e+00 : f32
    %11 = vector.broadcast %cst_12 : f32 to vector<8x256xf32>
    %12 = arith.maximumf %10, %11 : vector<8x256xf32>
    %c0_13 = arith.constant 0 : index
    %c0_14 = arith.constant 0 : index
    %13 = vector.load %arg9[%c0_13, %c0_14] : memref<72x256xf32, #tpu.memory_space<vmem>>, vector<8x256xf32>
    tpu.vector_store %arg9[%c0_13, %c0_14], %12 {strides = array<i32>} : memref<72x256xf32, #tpu.memory_space<vmem>>, vector<8x256xf32>,
    %c0_15 = arith.constant 0 : index
    %c112 = arith.constant 112 : index
    %14 = vector.load %arg8[%c0_15, %c112] : memref<8x512xf32, #tpu.memory_space<vmem>>, vector<8x256xf32>
    %15 = arith.addf %10, %14 : vector<8x256xf32>
    %cst_16 = arith.constant 0.000000e+00 : f32
    %16 = vector.broadcast %cst_16 : f32 to vector<8x256xf32>
    %17 = arith.maximumf %14, %16 : vector<8x256xf32>
    %c8 = arith.constant 8 : index
    %c0_17 = arith.constant 0 : index
    %18 = vector.load %arg9[%c8, %c0_17] : memref<72x256xf32, #tpu.memory_space<vmem>>, vector<8x256xf32>
    tpu.vector_store %arg9[%c8, %c0_17], %17 {strides = array<i32>} : memref<72x256xf32, #tpu.memory_space<vmem>>, vector<8x256xf32>,
    %c0_18 = arith.constant 0 : index
    %c113 = arith.constant 113 : index
    %19 = vector.load %arg8[%c0_18, %c113] : memref<8x512xf32, #tpu.memory_space<vmem>>, vector<8x256xf32>
    %20 = vector.broadcast %2 : vector<1x256xf32> to vector<8x256xf32>
    %21 = arith.mulf %19, %20 : vector<8x256xf32>
    %22 = arith.addf %15, %21 : vector<8x256xf32>
    %cst_19 = arith.constant 0.000000e+00 : f32
    %23 = vector.broadcast %cst_19 : f32 to vector<8x256xf32>
    %24 = arith.maximumf %21, %23 : vector<8x256xf32>
    %c16 = arith.constant 16 : index
    %c0_20 = arith.constant 0 : index
    %25 = vector.load %arg9[%c16, %c0_20] : memref<72x256xf32, #tpu.memory_space<vmem>>, vector<8x256xf32>
    tpu.vector_store %arg9[%c16, %c0_20], %24 {strides = array<i32>} : memref<72x256xf32, #tpu.memory_space<vmem>>, vector<8x256xf32>,
    %c0_21 = arith.constant 0 : index
    %c127 = arith.constant 127 : index
    %26 = vector.load %arg8[%c0_21, %c127] : memref<8x512xf32, #tpu.memory_space<vmem>>, vector<8x256xf32>
    %27 = vector.broadcast %1 : vector<1x256xf32> to vector<8x256xf32>
    %28 = arith.mulf %26, %27 : vector<8x256xf32>
    %29 = arith.addf %22, %28 : vector<8x256xf32>
    %cst_22 = arith.constant 0.000000e+00 : f32
    %30 = vector.broadcast %cst_22 : f32 to vector<8x256xf32>
    %31 = arith.maximumf %28, %30 : vector<8x256xf32>
    %c24 = arith.constant 24 : index
    %c0_23 = arith.constant 0 : index
    %32 = vector.load %arg9[%c24, %c0_23] : memref<72x256xf32, #tpu.memory_space<vmem>>, vector<8x256xf32>
    tpu.vector_store %arg9[%c24, %c0_23], %31 {strides = array<i32>} : memref<72x256xf32, #tpu.memory_space<vmem>>, vector<8x256xf32>,
    %c0_24 = arith.constant 0 : index
    %c128_25 = arith.constant 128 : index
    %33 = vector.load %arg8[%c0_24, %c128_25] : memref<8x512xf32, #tpu.memory_space<vmem>>, vector<8x256xf32>
    %34 = arith.addf %29, %33 : vector<8x256xf32>
    %cst_26 = arith.constant 0.000000e+00 : f32
    %35 = vector.broadcast %cst_26 : f32 to vector<8x256xf32>
    %36 = arith.maximumf %33, %35 : vector<8x256xf32>
    %c32 = arith.constant 32 : index
    %c0_27 = arith.constant 0 : index
    %37 = vector.load %arg9[%c32, %c0_27] : memref<72x256xf32, #tpu.memory_space<vmem>>, vector<8x256xf32>
    tpu.vector_store %arg9[%c32, %c0_27], %36 {strides = array<i32>} : memref<72x256xf32, #tpu.memory_space<vmem>>, vector<8x256xf32>,
    %c0_28 = arith.constant 0 : index
    %c129 = arith.constant 129 : index
    %38 = vector.load %arg8[%c0_28, %c129] : memref<8x512xf32, #tpu.memory_space<vmem>>, vector<8x256xf32>
    %39 = vector.broadcast %2 : vector<1x256xf32> to vector<8x256xf32>
    %40 = arith.mulf %38, %39 : vector<8x256xf32>
    %41 = arith.addf %34, %40 : vector<8x256xf32>
    %cst_29 = arith.constant 0.000000e+00 : f32
    %42 = vector.broadcast %cst_29 : f32 to vector<8x256xf32>
    %43 = arith.maximumf %40, %42 : vector<8x256xf32>
    %c40 = arith.constant 40 : index
    %c0_30 = arith.constant 0 : index
    %44 = vector.load %arg9[%c40, %c0_30] : memref<72x256xf32, #tpu.memory_space<vmem>>, vector<8x256xf32>
    tpu.vector_store %arg9[%c40, %c0_30], %43 {strides = array<i32>} : memref<72x256xf32, #tpu.memory_space<vmem>>, vector<8x256xf32>,
    %c0_31 = arith.constant 0 : index
    %c143 = arith.constant 143 : index
    %45 = vector.load %arg8[%c0_31, %c143] : memref<8x512xf32, #tpu.memory_space<vmem>>, vector<8x256xf32>
    %46 = vector.broadcast %1 : vector<1x256xf32> to vector<8x256xf32>
    %47 = arith.mulf %45, %46 : vector<8x256xf32>
    %48 = arith.addf %41, %47 : vector<8x256xf32>
    %cst_32 = arith.constant 0.000000e+00 : f32
    %49 = vector.broadcast %cst_32 : f32 to vector<8x256xf32>
    %50 = arith.maximumf %47, %49 : vector<8x256xf32>
    %c48 = arith.constant 48 : index
    %c0_33 = arith.constant 0 : index
    %51 = vector.load %arg9[%c48, %c0_33] : memref<72x256xf32, #tpu.memory_space<vmem>>, vector<8x256xf32>
    tpu.vector_store %arg9[%c48, %c0_33], %50 {strides = array<i32>} : memref<72x256xf32, #tpu.memory_space<vmem>>, vector<8x256xf32>,
    %c0_34 = arith.constant 0 : index
    %c144 = arith.constant 144 : index
    %52 = vector.load %arg8[%c0_34, %c144] : memref<8x512xf32, #tpu.memory_space<vmem>>, vector<8x256xf32>
    %53 = arith.addf %48, %52 : vector<8x256xf32>
    %cst_35 = arith.constant 0.000000e+00 : f32
    %54 = vector.broadcast %cst_35 : f32 to vector<8x256xf32>
    %55 = arith.maximumf %52, %54 : vector<8x256xf32>
    %c56 = arith.constant 56 : index
    %c0_36 = arith.constant 0 : index
    %56 = vector.load %arg9[%c56, %c0_36] : memref<72x256xf32, #tpu.memory_space<vmem>>, vector<8x256xf32>
    tpu.vector_store %arg9[%c56, %c0_36], %55 {strides = array<i32>} : memref<72x256xf32, #tpu.memory_space<vmem>>, vector<8x256xf32>,
    %c0_37 = arith.constant 0 : index
    %c145 = arith.constant 145 : index
    %57 = vector.load %arg8[%c0_37, %c145] : memref<8x512xf32, #tpu.memory_space<vmem>>, vector<8x256xf32>
    %58 = vector.broadcast %2 : vector<1x256xf32> to vector<8x256xf32>
    %59 = arith.mulf %57, %58 : vector<8x256xf32>
    %60 = arith.addf %53, %59 : vector<8x256xf32>
    %cst_38 = arith.constant 0.000000e+00 : f32
    %61 = vector.broadcast %cst_38 : f32 to vector<8x256xf32>
    %62 = arith.maximumf %59, %61 : vector<8x256xf32>
    %c64 = arith.constant 64 : index
    %c0_39 = arith.constant 0 : index
    %63 = vector.load %arg9[%c64, %c0_39] : memref<72x256xf32, #tpu.memory_space<vmem>>, vector<8x256xf32>
    tpu.vector_store %arg9[%c64, %c0_39], %62 {strides = array<i32>} : memref<72x256xf32, #tpu.memory_space<vmem>>, vector<8x256xf32>,
    %cst_40 = arith.constant 2.000000e-01 : f32
    %64 = vector.broadcast %cst_40 : f32 to vector<8x256xf32>
    %65 = arith.mulf %64, %6 : vector<8x256xf32>
    %66 = vector.broadcast %0 : vector<1x256xf32> to vector<8x256xf32>
    %67 = arith.mulf %60, %66 : vector<8x256xf32>
    %68 = arith.addf %65, %67 : vector<8x256xf32>
    %c0_41 = arith.constant 0 : index
    %c0_42 = arith.constant 0 : index
    %69 = vector.load %arg2[%c0_41, %c0_42] : memref<48x72xf32, #tpu.memory_space<vmem>>, vector<24x72xf32>
    %c0_43 = arith.constant 0 : index
    %c0_44 = arith.constant 0 : index
    %70 = vector.load %arg9[%c0_43, %c0_44] : memref<72x256xf32, #tpu.memory_space<vmem>>, vector<72x256xf32>
    %cst_45 = arith.constant dense<0.000000e+00> : vector<24x256xf32>
    %71 = tpu.matmul %69, %70, %cst_45 {dimension_numbers = #tpu.dot_dimension_numbers<[1], [0], [0], [1], [0, 0, 1, 1], [], []>} : vector<24x72xf32>, vector<72x256xf32>, vector<24x256xf32> -> vector<24x256xf32>
    %c0_46 = arith.constant 0 : index
    %c0_47 = arith.constant 0 : index
    %72 = vector.load %arg3[%c0_46, %c0_47] : memref<48x1xf32, #tpu.memory_space<vmem>>, vector<24x1xf32>
    %73 = vector.broadcast %72 : vector<24x1xf32> to vector<24x256xf32>
    %74 = arith.addf %71, %73 : vector<24x256xf32>
    %75 = vector.extract_strided_slice %74 {offsets = [0, 0], sizes = [8, 256], strides = [1, 1]} : vector<24x256xf32> to vector<8x256xf32>
    %76 = arith.addf %68, %75 : vector<8x256xf32>
    %77 = vector.extract_strided_slice %74 {offsets = [8, 0], sizes = [8, 256], strides = [1, 1]} : vector<24x256xf32> to vector<8x256xf32>
    %78 = arith.addf %68, %77 : vector<8x256xf32>
    %79 = vector.extract_strided_slice %74 {offsets = [16, 0], sizes = [8, 256], strides = [1, 1]} : vector<24x256xf32> to vector<8x256xf32>
    %80 = arith.addf %68, %79 : vector<8x256xf32>
    %c0_48 = arith.constant 0 : index
    %c128_49 = arith.constant 128 : index
    %81 = vector.load %arg8[%c0_48, %c128_49] : memref<8x512xf32, #tpu.memory_space<vmem>>, vector<8x256xf32>
    tpu.vector_store %arg8[%c0_48, %c128_49], %76 {strides = array<i32>} : memref<8x512xf32, #tpu.memory_space<vmem>>, vector<8x256xf32>,
    %c0_50 = arith.constant 0 : index
    %c111_51 = arith.constant 111 : index
    %82 = vector.load %arg8[%c0_50, %c111_51] : memref<8x512xf32, #tpu.memory_space<vmem>>, vector<8x256xf32>
    %83 = vector.broadcast %1 : vector<1x256xf32> to vector<8x256xf32>
    %84 = arith.mulf %82, %83 : vector<8x256xf32>
    %cst_52 = arith.constant 0.000000e+00 : f32
    %85 = vector.broadcast %cst_52 : f32 to vector<8x256xf32>
    %86 = arith.maximumf %84, %85 : vector<8x256xf32>
    %c0_53 = arith.constant 0 : index
    %c0_54 = arith.constant 0 : index
    %87 = vector.load %arg9[%c0_53, %c0_54] : memref<72x256xf32, #tpu.memory_space<vmem>>, vector<8x256xf32>
    tpu.vector_store %arg9[%c0_53, %c0_54], %86 {strides = array<i32>} : memref<72x256xf32, #tpu.memory_space<vmem>>, vector<8x256xf32>,
    %c0_55 = arith.constant 0 : index
    %c112_56 = arith.constant 112 : index
    %88 = vector.load %arg8[%c0_55, %c112_56] : memref<8x512xf32, #tpu.memory_space<vmem>>, vector<8x256xf32>
    %89 = arith.addf %84, %88 : vector<8x256xf32>
    %cst_57 = arith.constant 0.000000e+00 : f32
    %90 = vector.broadcast %cst_57 : f32 to vector<8x256xf32>
    %91 = arith.maximumf %88, %90 : vector<8x256xf32>
    %c8_58 = arith.constant 8 : index
    %c0_59 = arith.constant 0 : index
    %92 = vector.load %arg9[%c8_58, %c0_59] : memref<72x256xf32, #tpu.memory_space<vmem>>, vector<8x256xf32>
    tpu.vector_store %arg9[%c8_58, %c0_59], %91 {strides = array<i32>} : memref<72x256xf32, #tpu.memory_space<vmem>>, vector<8x256xf32>,
    %c0_60 = arith.constant 0 : index
    %c113_61 = arith.constant 113 : index
    %93 = vector.load %arg8[%c0_60, %c113_61] : memref<8x512xf32, #tpu.memory_space<vmem>>, vector<8x256xf32>
    %94 = vector.broadcast %2 : vector<1x256xf32> to vector<8x256xf32>
    %95 = arith.mulf %93, %94 : vector<8x256xf32>
    %96 = arith.addf %89, %95 : vector<8x256xf32>
    %cst_62 = arith.constant 0.000000e+00 : f32
    %97 = vector.broadcast %cst_62 : f32 to vector<8x256xf32>
    %98 = arith.maximumf %95, %97 : vector<8x256xf32>
    %c16_63 = arith.constant 16 : index
    %c0_64 = arith.constant 0 : index
    %99 = vector.load %arg9[%c16_63, %c0_64] : memref<72x256xf32, #tpu.memory_space<vmem>>, vector<8x256xf32>
    tpu.vector_store %arg9[%c16_63, %c0_64], %98 {strides = array<i32>} : memref<72x256xf32, #tpu.memory_space<vmem>>, vector<8x256xf32>,
    %c0_65 = arith.constant 0 : index
    %c127_66 = arith.constant 127 : index
    %100 = vector.load %arg8[%c0_65, %c127_66] : memref<8x512xf32, #tpu.memory_space<vmem>>, vector<8x256xf32>
    %101 = vector.broadcast %1 : vector<1x256xf32> to vector<8x256xf32>
    %102 = arith.mulf %100, %101 : vector<8x256xf32>
    %103 = arith.addf %96, %102 : vector<8x256xf32>
    %cst_67 = arith.constant 0.000000e+00 : f32
    %104 = vector.broadcast %cst_67 : f32 to vector<8x256xf32>
    %105 = arith.maximumf %102, %104 : vector<8x256xf32>
    %c24_68 = arith.constant 24 : index
    %c0_69 = arith.constant 0 : index
    %106 = vector.load %arg9[%c24_68, %c0_69] : memref<72x256xf32, #tpu.memory_space<vmem>>, vector<8x256xf32>
    tpu.vector_store %arg9[%c24_68, %c0_69], %105 {strides = array<i32>} : memref<72x256xf32, #tpu.memory_space<vmem>>, vector<8x256xf32>,
    %c0_70 = arith.constant 0 : index
    %c128_71 = arith.constant 128 : index
    %107 = vector.load %arg8[%c0_70, %c128_71] : memref<8x512xf32, #tpu.memory_space<vmem>>, vector<8x256xf32>
    %108 = arith.addf %103, %107 : vector<8x256xf32>
    %cst_72 = arith.constant 0.000000e+00 : f32
    %109 = vector.broadcast %cst_72 : f32 to vector<8x256xf32>
    %110 = arith.maximumf %107, %109 : vector<8x256xf32>
    %c32_73 = arith.constant 32 : index
    %c0_74 = arith.constant 0 : index
    %111 = vector.load %arg9[%c32_73, %c0_74] : memref<72x256xf32, #tpu.memory_space<vmem>>, vector<8x256xf32>
    tpu.vector_store %arg9[%c32_73, %c0_74], %110 {strides = array<i32>} : memref<72x256xf32, #tpu.memory_space<vmem>>, vector<8x256xf32>,
    %c0_75 = arith.constant 0 : index
    %c129_76 = arith.constant 129 : index
    %112 = vector.load %arg8[%c0_75, %c129_76] : memref<8x512xf32, #tpu.memory_space<vmem>>, vector<8x256xf32>
    %113 = vector.broadcast %2 : vector<1x256xf32> to vector<8x256xf32>
    %114 = arith.mulf %112, %113 : vector<8x256xf32>
    %115 = arith.addf %108, %114 : vector<8x256xf32>
    %cst_77 = arith.constant 0.000000e+00 : f32
    %116 = vector.broadcast %cst_77 : f32 to vector<8x256xf32>
    %117 = arith.maximumf %114, %116 : vector<8x256xf32>
    %c40_78 = arith.constant 40 : index
    %c0_79 = arith.constant 0 : index
    %118 = vector.load %arg9[%c40_78, %c0_79] : memref<72x256xf32, #tpu.memory_space<vmem>>, vector<8x256xf32>
    tpu.vector_store %arg9[%c40_78, %c0_79], %117 {strides = array<i32>} : memref<72x256xf32, #tpu.memory_space<vmem>>, vector<8x256xf32>,
    %c0_80 = arith.constant 0 : index
    %c143_81 = arith.constant 143 : index
    %119 = vector.load %arg8[%c0_80, %c143_81] : memref<8x512xf32, #tpu.memory_space<vmem>>, vector<8x256xf32>
    %120 = vector.broadcast %1 : vector<1x256xf32> to vector<8x256xf32>
    %121 = arith.mulf %119, %120 : vector<8x256xf32>
    %122 = arith.addf %115, %121 : vector<8x256xf32>
    %cst_82 = arith.constant 0.000000e+00 : f32
    %123 = vector.broadcast %cst_82 : f32 to vector<8x256xf32>
    %124 = arith.maximumf %121, %123 : vector<8x256xf32>
    %c48_83 = arith.constant 48 : index
    %c0_84 = arith.constant 0 : index
    %125 = vector.load %arg9[%c48_83, %c0_84] : memref<72x256xf32, #tpu.memory_space<vmem>>, vector<8x256xf32>
    tpu.vector_store %arg9[%c48_83, %c0_84], %124 {strides = array<i32>} : memref<72x256xf32, #tpu.memory_space<vmem>>, vector<8x256xf32>,
    %c0_85 = arith.constant 0 : index
    %c144_86 = arith.constant 144 : index
    %126 = vector.load %arg8[%c0_85, %c144_86] : memref<8x512xf32, #tpu.memory_space<vmem>>, vector<8x256xf32>
    %127 = arith.addf %122, %126 : vector<8x256xf32>
    %cst_87 = arith.constant 0.000000e+00 : f32
    %128 = vector.broadcast %cst_87 : f32 to vector<8x256xf32>
    %129 = arith.maximumf %126, %128 : vector<8x256xf32>
    %c56_88 = arith.constant 56 : index
    %c0_89 = arith.constant 0 : index
    %130 = vector.load %arg9[%c56_88, %c0_89] : memref<72x256xf32, #tpu.memory_space<vmem>>, vector<8x256xf32>
    tpu.vector_store %arg9[%c56_88, %c0_89], %129 {strides = array<i32>} : memref<72x256xf32, #tpu.memory_space<vmem>>, vector<8x256xf32>,
    %c0_90 = arith.constant 0 : index
    %c145_91 = arith.constant 145 : index
    %131 = vector.load %arg8[%c0_90, %c145_91] : memref<8x512xf32, #tpu.memory_space<vmem>>, vector<8x256xf32>
    %132 = vector.broadcast %2 : vector<1x256xf32> to vector<8x256xf32>
    %133 = arith.mulf %131, %132 : vector<8x256xf32>
    %134 = arith.addf %127, %133 : vector<8x256xf32>
    %cst_92 = arith.constant 0.000000e+00 : f32
    %135 = vector.broadcast %cst_92 : f32 to vector<8x256xf32>
    %136 = arith.maximumf %133, %135 : vector<8x256xf32>
    %c64_93 = arith.constant 64 : index
    %c0_94 = arith.constant 0 : index
    %137 = vector.load %arg9[%c64_93, %c0_94] : memref<72x256xf32, #tpu.memory_space<vmem>>, vector<8x256xf32>
    tpu.vector_store %arg9[%c64_93, %c0_94], %136 {strides = array<i32>} : memref<72x256xf32, #tpu.memory_space<vmem>>, vector<8x256xf32>,
    %cst_95 = arith.constant 2.000000e-01 : f32
    %138 = vector.broadcast %cst_95 : f32 to vector<8x256xf32>
    %139 = arith.mulf %138, %76 : vector<8x256xf32>
    %140 = vector.broadcast %0 : vector<1x256xf32> to vector<8x256xf32>
    %141 = arith.mulf %134, %140 : vector<8x256xf32>
    %142 = arith.addf %139, %141 : vector<8x256xf32>
    %c24_96 = arith.constant 24 : index
    %c0_97 = arith.constant 0 : index
    %143 = vector.load %arg2[%c24_96, %c0_97] : memref<48x72xf32, #tpu.memory_space<vmem>>, vector<16x72xf32>
    %c0_98 = arith.constant 0 : index
    %c0_99 = arith.constant 0 : index
    %144 = vector.load %arg9[%c0_98, %c0_99] : memref<72x256xf32, #tpu.memory_space<vmem>>, vector<72x256xf32>
    %cst_100 = arith.constant dense<0.000000e+00> : vector<16x256xf32>
    %145 = tpu.matmul %143, %144, %cst_100 {dimension_numbers = #tpu.dot_dimension_numbers<[1], [0], [0], [1], [0, 0, 1, 1], [], []>} : vector<16x72xf32>, vector<72x256xf32>, vector<16x256xf32> -> vector<16x256xf32>
    %c24_101 = arith.constant 24 : index
    %c0_102 = arith.constant 0 : index
    %146 = vector.load %arg3[%c24_101, %c0_102] : memref<48x1xf32, #tpu.memory_space<vmem>>, vector<16x1xf32>
    %147 = vector.broadcast %146 : vector<16x1xf32> to vector<16x256xf32>
    %148 = arith.addf %145, %147 : vector<16x256xf32>
    %149 = vector.extract_strided_slice %148 {offsets = [0, 0], sizes = [8, 256], strides = [1, 1]} : vector<16x256xf32> to vector<8x256xf32>
    %150 = arith.addf %142, %149 : vector<8x256xf32>
    %151 = vector.extract_strided_slice %148 {offsets = [8, 0], sizes = [8, 256], strides = [1, 1]} : vector<16x256xf32> to vector<8x256xf32>
    %152 = arith.addf %142, %151 : vector<8x256xf32>
    %153 = arith.addf %78, %150 : vector<8x256xf32>
    %c0_103 = arith.constant 0 : index
    %c128_104 = arith.constant 128 : index
    %154 = vector.load %arg8[%c0_103, %c128_104] : memref<8x512xf32, #tpu.memory_space<vmem>>, vector<8x256xf32>
    tpu.vector_store %arg8[%c0_103, %c128_104], %153 {strides = array<i32>} : memref<8x512xf32, #tpu.memory_space<vmem>>, vector<8x256xf32>,
    %c0_105 = arith.constant 0 : index
    %c111_106 = arith.constant 111 : index
    %155 = vector.load %arg8[%c0_105, %c111_106] : memref<8x512xf32, #tpu.memory_space<vmem>>, vector<8x256xf32>
    %156 = vector.broadcast %1 : vector<1x256xf32> to vector<8x256xf32>
    %157 = arith.mulf %155, %156 : vector<8x256xf32>
    %cst_107 = arith.constant 0.000000e+00 : f32
    %158 = vector.broadcast %cst_107 : f32 to vector<8x256xf32>
    %159 = arith.maximumf %157, %158 : vector<8x256xf32>
    %c0_108 = arith.constant 0 : index
    %c0_109 = arith.constant 0 : index
    %160 = vector.load %arg9[%c0_108, %c0_109] : memref<72x256xf32, #tpu.memory_space<vmem>>, vector<8x256xf32>
    tpu.vector_store %arg9[%c0_108, %c0_109], %159 {strides = array<i32>} : memref<72x256xf32, #tpu.memory_space<vmem>>, vector<8x256xf32>,
    %c0_110 = arith.constant 0 : index
    %c112_111 = arith.constant 112 : index
    %161 = vector.load %arg8[%c0_110, %c112_111] : memref<8x512xf32, #tpu.memory_space<vmem>>, vector<8x256xf32>
    %162 = arith.addf %157, %161 : vector<8x256xf32>
    %cst_112 = arith.constant 0.000000e+00 : f32
    %163 = vector.broadcast %cst_112 : f32 to vector<8x256xf32>
    %164 = arith.maximumf %161, %163 : vector<8x256xf32>
    %c8_113 = arith.constant 8 : index
    %c0_114 = arith.constant 0 : index
    %165 = vector.load %arg9[%c8_113, %c0_114] : memref<72x256xf32, #tpu.memory_space<vmem>>, vector<8x256xf32>
    tpu.vector_store %arg9[%c8_113, %c0_114], %164 {strides = array<i32>} : memref<72x256xf32, #tpu.memory_space<vmem>>, vector<8x256xf32>,
    %c0_115 = arith.constant 0 : index
    %c113_116 = arith.constant 113 : index
    %166 = vector.load %arg8[%c0_115, %c113_116] : memref<8x512xf32, #tpu.memory_space<vmem>>, vector<8x256xf32>
    %167 = vector.broadcast %2 : vector<1x256xf32> to vector<8x256xf32>
    %168 = arith.mulf %166, %167 : vector<8x256xf32>
    %169 = arith.addf %162, %168 : vector<8x256xf32>
    %cst_117 = arith.constant 0.000000e+00 : f32
    %170 = vector.broadcast %cst_117 : f32 to vector<8x256xf32>
    %171 = arith.maximumf %168, %170 : vector<8x256xf32>
    %c16_118 = arith.constant 16 : index
    %c0_119 = arith.constant 0 : index
    %172 = vector.load %arg9[%c16_118, %c0_119] : memref<72x256xf32, #tpu.memory_space<vmem>>, vector<8x256xf32>
    tpu.vector_store %arg9[%c16_118, %c0_119], %171 {strides = array<i32>} : memref<72x256xf32, #tpu.memory_space<vmem>>, vector<8x256xf32>,
    %c0_120 = arith.constant 0 : index
    %c127_121 = arith.constant 127 : index
    %173 = vector.load %arg8[%c0_120, %c127_121] : memref<8x512xf32, #tpu.memory_space<vmem>>, vector<8x256xf32>
    %174 = vector.broadcast %1 : vector<1x256xf32> to vector<8x256xf32>
    %175 = arith.mulf %173, %174 : vector<8x256xf32>
    %176 = arith.addf %169, %175 : vector<8x256xf32>
    %cst_122 = arith.constant 0.000000e+00 : f32
    %177 = vector.broadcast %cst_122 : f32 to vector<8x256xf32>
    %178 = arith.maximumf %175, %177 : vector<8x256xf32>
    %c24_123 = arith.constant 24 : index
    %c0_124 = arith.constant 0 : index
    %179 = vector.load %arg9[%c24_123, %c0_124] : memref<72x256xf32, #tpu.memory_space<vmem>>, vector<8x256xf32>
    tpu.vector_store %arg9[%c24_123, %c0_124], %178 {strides = array<i32>} : memref<72x256xf32, #tpu.memory_space<vmem>>, vector<8x256xf32>,
    %c0_125 = arith.constant 0 : index
    %c128_126 = arith.constant 128 : index
    %180 = vector.load %arg8[%c0_125, %c128_126] : memref<8x512xf32, #tpu.memory_space<vmem>>, vector<8x256xf32>
    %181 = arith.addf %176, %180 : vector<8x256xf32>
    %cst_127 = arith.constant 0.000000e+00 : f32
    %182 = vector.broadcast %cst_127 : f32 to vector<8x256xf32>
    %183 = arith.maximumf %180, %182 : vector<8x256xf32>
    %c32_128 = arith.constant 32 : index
    %c0_129 = arith.constant 0 : index
    %184 = vector.load %arg9[%c32_128, %c0_129] : memref<72x256xf32, #tpu.memory_space<vmem>>, vector<8x256xf32>
    tpu.vector_store %arg9[%c32_128, %c0_129], %183 {strides = array<i32>} : memref<72x256xf32, #tpu.memory_space<vmem>>, vector<8x256xf32>,
    %c0_130 = arith.constant 0 : index
    %c129_131 = arith.constant 129 : index
    %185 = vector.load %arg8[%c0_130, %c129_131] : memref<8x512xf32, #tpu.memory_space<vmem>>, vector<8x256xf32>
    %186 = vector.broadcast %2 : vector<1x256xf32> to vector<8x256xf32>
    %187 = arith.mulf %185, %186 : vector<8x256xf32>
    %188 = arith.addf %181, %187 : vector<8x256xf32>
    %cst_132 = arith.constant 0.000000e+00 : f32
    %189 = vector.broadcast %cst_132 : f32 to vector<8x256xf32>
    %190 = arith.maximumf %187, %189 : vector<8x256xf32>
    %c40_133 = arith.constant 40 : index
    %c0_134 = arith.constant 0 : index
    %191 = vector.load %arg9[%c40_133, %c0_134] : memref<72x256xf32, #tpu.memory_space<vmem>>, vector<8x256xf32>
    tpu.vector_store %arg9[%c40_133, %c0_134], %190 {strides = array<i32>} : memref<72x256xf32, #tpu.memory_space<vmem>>, vector<8x256xf32>,
    %c0_135 = arith.constant 0 : index
    %c143_136 = arith.constant 143 : index
    %192 = vector.load %arg8[%c0_135, %c143_136] : memref<8x512xf32, #tpu.memory_space<vmem>>, vector<8x256xf32>
    %193 = vector.broadcast %1 : vector<1x256xf32> to vector<8x256xf32>
    %194 = arith.mulf %192, %193 : vector<8x256xf32>
    %195 = arith.addf %188, %194 : vector<8x256xf32>
    %cst_137 = arith.constant 0.000000e+00 : f32
    %196 = vector.broadcast %cst_137 : f32 to vector<8x256xf32>
    %197 = arith.maximumf %194, %196 : vector<8x256xf32>
    %c48_138 = arith.constant 48 : index
    %c0_139 = arith.constant 0 : index
    %198 = vector.load %arg9[%c48_138, %c0_139] : memref<72x256xf32, #tpu.memory_space<vmem>>, vector<8x256xf32>
    tpu.vector_store %arg9[%c48_138, %c0_139], %197 {strides = array<i32>} : memref<72x256xf32, #tpu.memory_space<vmem>>, vector<8x256xf32>,
    %c0_140 = arith.constant 0 : index
    %c144_141 = arith.constant 144 : index
    %199 = vector.load %arg8[%c0_140, %c144_141] : memref<8x512xf32, #tpu.memory_space<vmem>>, vector<8x256xf32>
    %200 = arith.addf %195, %199 : vector<8x256xf32>
    %cst_142 = arith.constant 0.000000e+00 : f32
    %201 = vector.broadcast %cst_142 : f32 to vector<8x256xf32>
    %202 = arith.maximumf %199, %201 : vector<8x256xf32>
    %c56_143 = arith.constant 56 : index
    %c0_144 = arith.constant 0 : index
    %203 = vector.load %arg9[%c56_143, %c0_144] : memref<72x256xf32, #tpu.memory_space<vmem>>, vector<8x256xf32>
    tpu.vector_store %arg9[%c56_143, %c0_144], %202 {strides = array<i32>} : memref<72x256xf32, #tpu.memory_space<vmem>>, vector<8x256xf32>,
    %c0_145 = arith.constant 0 : index
    %c145_146 = arith.constant 145 : index
    %204 = vector.load %arg8[%c0_145, %c145_146] : memref<8x512xf32, #tpu.memory_space<vmem>>, vector<8x256xf32>
    %205 = vector.broadcast %2 : vector<1x256xf32> to vector<8x256xf32>
    %206 = arith.mulf %204, %205 : vector<8x256xf32>
    %207 = arith.addf %200, %206 : vector<8x256xf32>
    %cst_147 = arith.constant 0.000000e+00 : f32
    %208 = vector.broadcast %cst_147 : f32 to vector<8x256xf32>
    %209 = arith.maximumf %206, %208 : vector<8x256xf32>
    %c64_148 = arith.constant 64 : index
    %c0_149 = arith.constant 0 : index
    %210 = vector.load %arg9[%c64_148, %c0_149] : memref<72x256xf32, #tpu.memory_space<vmem>>, vector<8x256xf32>
    tpu.vector_store %arg9[%c64_148, %c0_149], %209 {strides = array<i32>} : memref<72x256xf32, #tpu.memory_space<vmem>>, vector<8x256xf32>,
    %cst_150 = arith.constant 2.000000e-01 : f32
    %211 = vector.broadcast %cst_150 : f32 to vector<8x256xf32>
    %212 = arith.mulf %211, %153 : vector<8x256xf32>
    %213 = vector.broadcast %0 : vector<1x256xf32> to vector<8x256xf32>
    %214 = arith.mulf %207, %213 : vector<8x256xf32>
    %215 = arith.addf %212, %214 : vector<8x256xf32>
    %c40_151 = arith.constant 40 : index
    %c0_152 = arith.constant 0 : index
    %216 = vector.load %arg2[%c40_151, %c0_152] : memref<48x72xf32, #tpu.memory_space<vmem>>, vector<8x72xf32>
    %c0_153 = arith.constant 0 : index
    %c0_154 = arith.constant 0 : index
    %217 = vector.load %arg9[%c0_153, %c0_154] : memref<72x256xf32, #tpu.memory_space<vmem>>, vector<72x256xf32>
    %cst_155 = arith.constant dense<0.000000e+00> : vector<8x256xf32>
    %218 = tpu.matmul %216, %217, %cst_155 {dimension_numbers = #tpu.dot_dimension_numbers<[1], [0], [0], [1], [0, 0, 1, 1], [], []>} : vector<8x72xf32>, vector<72x256xf32>, vector<8x256xf32> -> vector<8x256xf32>
    %c40_156 = arith.constant 40 : index
    %c0_157 = arith.constant 0 : index
    %219 = vector.load %arg3[%c40_156, %c0_157] : memref<48x1xf32, #tpu.memory_space<vmem>>, vector<8x1xf32>
    %220 = vector.broadcast %219 : vector<8x1xf32> to vector<8x256xf32>
    %221 = arith.addf %218, %220 : vector<8x256xf32>
    %222 = arith.addf %215, %221 : vector<8x256xf32>
    %223 = arith.addf %80, %152 : vector<8x256xf32>
    %224 = arith.addf %223, %222 : vector<8x256xf32>
    %c0_158 = arith.constant 0 : index
    %c0_159 = arith.constant 0 : index
    %c0_160 = arith.constant 0 : index
    %225 = vector.load %arg7[%c0_158, %c0_159, %c0_160] : memref<1x8x256xf32, #tpu.memory_space<vmem>>, vector<1x8x256xf32>
    %226 = vector.shape_cast %225 : vector<1x8x256xf32> to vector<8x256xf32>
    %227 = vector.shape_cast %224 : vector<8x256xf32> to vector<1x8x256xf32>
    tpu.vector_store %arg7[%c0_158, %c0_159, %c0_160], %227 {strides = array<i32>} : memref<1x8x256xf32, #tpu.memory_space<vmem>>, vector<1x8x256xf32>,
    return
  }
  func.func @transform_0(%arg0: i32) -> (i32, i32, i32) {
    %c0_i32 = arith.constant 0 : i32
    %c0_i32_0 = arith.constant 0 : i32
    %c0_i32_1 = arith.constant 0 : i32
    return %arg0, %c0_i32, %c0_i32_0 : i32, i32, i32
  }
  func.func @transform_1(%arg0: i32) -> (i32, i32) {
    %c0_i32 = arith.constant 0 : i32
    %c0_i32_0 = arith.constant 0 : i32
    %c0_i32_1 = arith.constant 0 : i32
    return %c0_i32, %c0_i32_0 : i32, i32
  }
  func.func @transform_2(%arg0: i32) -> (i32, i32) {
    %c0_i32 = arith.constant 0 : i32
    %c0_i32_0 = arith.constant 0 : i32
    %c0_i32_1 = arith.constant 0 : i32
    return %c0_i32, %c0_i32_0 : i32, i32
  }
  func.func @transform_3(%arg0: i32) -> (i32, i32) {
    %c0_i32 = arith.constant 0 : i32
    %c0_i32_0 = arith.constant 0 : i32
    %c0_i32_1 = arith.constant 0 : i32
    return %c0_i32, %c0_i32_0 : i32, i32
  }
  func.func @transform_4(%arg0: i32) -> (i32, i32) {
    %c0_i32 = arith.constant 0 : i32
    %c0_i32_0 = arith.constant 0 : i32
    %c0_i32_1 = arith.constant 0 : i32
    return %c0_i32, %c0_i32_0 : i32, i32
  }
  func.func @transform_5(%arg0: i32) -> (i32, i32) {
    %c0_i32 = arith.constant 0 : i32
    %c0_i32_0 = arith.constant 0 : i32
    %c0_i32_1 = arith.constant 0 : i32
    return %c0_i32, %c0_i32_0 : i32, i32
  }
  func.func @transform_6(%arg0: i32) -> (i32, i32, i32) {
    %c0_i32 = arith.constant 0 : i32
    %c0_i32_0 = arith.constant 0 : i32
    %c0_i32_1 = arith.constant 0 : i32
    return %arg0, %c0_i32, %c0_i32_0 : i32, i32, i32
  }
}

</mosaic_0001>

<llo_original>
// kernel: cell_forward.1
$region0: #{cell_forward.1}
  #allocation0 [shape = 'u32[]', space=smem, size = 0x4, offset = 0x4, fixed_abs, tag = 'smem constant byte address 0x4 - core index']
  #allocation1 [shape = 'u32[144,128]{1,0:T(1,128)}', space=vmem, size = 0x12000, scoped, tag = 'internal scratch']
  #allocation2 [shape = 'f32[8,512]{1,0:T(8,128)}', space=vmem, size = 0x4000, scoped, tag = 'scratch operand']
  #allocation3 [shape = 'f32[72,256]{1,0:T(8,128)}', space=vmem, size = 0x12000, scoped, tag = 'scratch operand']
  %s0 = inlined_call_operand.vmem [shape: f32[2,8,256], index: 0, kind: input, shape index: {}]
  %s1 = inlined_call_operand.vmem [shape: f32[48,72], index: 1, kind: input, shape index: {}]
  %s2 = inlined_call_operand.vmem [shape: f32[48,1], index: 2, kind: input, shape index: {}]
  %s3 = inlined_call_operand.vmem [shape: f32[1,256], index: 3, kind: input, shape index: {}]
  %s4 = inlined_call_operand.vmem [shape: f32[1,256], index: 4, kind: input, shape index: {}]
  %s5 = inlined_call_operand.vmem [shape: f32[1,256], index: 5, kind: input, shape index: {}]
  %s6 = inlined_call_operand.vmem [shape: f32[2,8,256], index: 6, kind: output, shape index: {}]
  %s7 = sld [smem:[#allocation0]]
  $region57: #{cell_forward.1} parent=0
    _
  %s9 = ssub.s32 1, %s7
  %s10 = scalar_select 0, %s9, %s7
  loop: start=0, step=1, limit=4
  $region2: #{cell_forward.1} parent=0 // loop_pre_header
    _
  $region3: #{cell_forward.1} parent=0 // loop_header
    %s12 = sphi 0, %s16
    %p13 = scmp.ge.s32.totalorder %s12, 4
    %s22 = sphi 0, %s24
    %s25 = sphi 0, %s22
    %s26 = sphi 0, %s25
    %s42 = sphi 0, %s26
    %s46 = sphi 0, %s46
    %s48 = sphi 0, %s46
    %s49 = sphi 0, %s48
    %s63 = sphi 0, %s49
    %s67 = sphi 0, %s67
    %s69 = sphi 0, %s67
    %s70 = sphi 0, %s69
    %s84 = sphi 0, %s70
    %s88 = sphi 0, %s88
    %s90 = sphi 0, %s88
    %s91 = sphi 0, %s90
    %s105 = sphi 0, %s91
    %s109 = sphi 0, %s109
    %s111 = sphi 0, %s109
    %s112 = sphi 0, %s111
    %s126 = sphi 0, %s112
    %s130 = sphi 0, %s130
    %s132 = sphi 0, %s130
    %s133 = sphi 0, %s132
    %s147 = sphi 0, %s133
    %s153 = sphi 0, %s155
    %s156 = sphi 0, %s153
    %s157 = sphi 0, %s156
    %s173 = sphi 0, %s157
  $region4: #{cell_forward.1} parent=0 // loop_header_branch
    %15 = sbr.rel (%p13) target = $region8
  $region5: #{cell_forward.1} parent=0 // loop_body
    %s17 = ssub.s32 %s12, 1
    %s18 = ssub.s32 %s12, 2
    %s19 = sadd.s32 %s12, 1
    %s20 = ssub.s32 %s12, %s19
    %p21 = scmp.eq.s32.totalorder %s20, 0
    %s23 = sadd.s32 %s22, 1
    %s24 = scalar_select %p21, %s22, %s23
    %p27 = pneg %p21
    %p28 = scmp.eq.s32.totalorder %s12, 1
    %p29 = por %p27, %p28
    %p30 = scmp.ne.s32.totalorder %s22, %s25
    %p31 = scmp.eq.s32.totalorder %s12, 0
    %p32 = por %p30, %p31
    %p33 = scmp.ne.s32.totalorder %s22, %s25
    %p34 = scmp.eq.s32.totalorder %s17, 1
    %p35 = por %p33, %p34
    %p36 = scmp.ne.s32.totalorder %s25, %s26
    %p37 = scmp.eq.s32.totalorder %s17, 0
    %p38 = por %p36, %p37
    %p39 = scmp.ne.s32.totalorder %s25, %s26
    %p40 = scmp.eq.s32.totalorder %s18, 1
    %p41 = por %p39, %p40
    %p43 = scmp.ne.s32.totalorder %s26, %s42
    %p44 = scmp.eq.s32.totalorder %s18, 0
    %p45 = por %p43, %p44
    %s47 = sadd.s32 %s46, 1
    %p50 = scmp.eq.s32.totalorder %s12, 1
    %p51 = scmp.ne.s32.totalorder %s46, %s48
    %p52 = scmp.eq.s32.totalorder %s12, 0
    %p53 = por %p51, %p52
    %p54 = scmp.ne.s32.totalorder %s46, %s48
    %p55 = scmp.eq.s32.totalorder %s17, 1
    %p56 = por %p54, %p55
    %p57 = scmp.ne.s32.totalorder %s48, %s49
    %p58 = scmp.eq.s32.totalorder %s17, 0
    %p59 = por %p57, %p58
    %p60 = scmp.ne.s32.totalorder %s48, %s49
    %p61 = scmp.eq.s32.totalorder %s18, 1
    %p62 = por %p60, %p61
    %p64 = scmp.ne.s32.totalorder %s49, %s63
    %p65 = scmp.eq.s32.totalorder %s18, 0
    %p66 = por %p64, %p65
    %s68 = sadd.s32 %s67, 1
    %p71 = scmp.eq.s32.totalorder %s12, 1
    %p72 = scmp.ne.s32.totalorder %s67, %s69
    %p73 = scmp.eq.s32.totalorder %s12, 0
    %p74 = por %p72, %p73
    %p75 = scmp.ne.s32.totalorder %s67, %s69
    %p76 = scmp.eq.s32.totalorder %s17, 1
    %p77 = por %p75, %p76
    %p78 = scmp.ne.s32.totalorder %s69, %s70
    %p79 = scmp.eq.s32.totalorder %s17, 0
    %p80 = por %p78, %p79
    %p81 = scmp.ne.s32.totalorder %s69, %s70
    %p82 = scmp.eq.s32.totalorder %s18, 1
    %p83 = por %p81, %p82
    %p85 = scmp.ne.s32.totalorder %s70, %s84
    %p86 = scmp.eq.s32.totalorder %s18, 0
    %p87 = por %p85, %p86
    %s89 = sadd.s32 %s88, 1
    %p92 = scmp.eq.s32.totalorder %s12, 1
    %p93 = scmp.ne.s32.totalorder %s88, %s90
    %p94 = scmp.eq.s32.totalorder %s12, 0
    %p95 = por %p93, %p94
    %p96 = scmp.ne.s32.totalorder %s88, %s90
    %p97 = scmp.eq.s32.totalorder %s17, 1
    %p98 = por %p96, %p97
    %p99 = scmp.ne.s32.totalorder %s90, %s91
    %p100 = scmp.eq.s32.totalorder %s17, 0
    %p101 = por %p99, %p100
    %p102 = scmp.ne.s32.totalorder %s90, %s91
    %p103 = scmp.eq.s32.totalorder %s18, 1
    %p104 = por %p102, %p103
    %p106 = scmp.ne.s32.totalorder %s91, %s105
    %p107 = scmp.eq.s32.totalorder %s18, 0
    %p108 = por %p106, %p107
    %s110 = sadd.s32 %s109, 1
    %p113 = scmp.eq.s32.totalorder %s12, 1
    %p114 = scmp.ne.s32.totalorder %s109, %s111
    %p115 = scmp.eq.s32.totalorder %s12, 0
    %p116 = por %p114, %p115
    %p117 = scmp.ne.s32.totalorder %s109, %s111
    %p118 = scmp.eq.s32.totalorder %s17, 1
    %p119 = por %p117, %p118
    %p120 = scmp.ne.s32.totalorder %s111, %s112
    %p121 = scmp.eq.s32.totalorder %s17, 0
    %p122 = por %p120, %p121
    %p123 = scmp.ne.s32.totalorder %s111, %s112
    %p124 = scmp.eq.s32.totalorder %s18, 1
    %p125 = por %p123, %p124
    %p127 = scmp.ne.s32.totalorder %s112, %s126
    %p128 = scmp.eq.s32.totalorder %s18, 0
    %p129 = por %p127, %p128
    %s131 = sadd.s32 %s130, 1
    %p134 = scmp.eq.s32.totalorder %s12, 1
    %p135 = scmp.ne.s32.totalorder %s130, %s132
    %p136 = scmp.eq.s32.totalorder %s12, 0
    %p137 = por %p135, %p136
    %p138 = scmp.ne.s32.totalorder %s130, %s132
    %p139 = scmp.eq.s32.totalorder %s17, 1
    %p140 = por %p138, %p139
    %p141 = scmp.ne.s32.totalorder %s132, %s133
    %p142 = scmp.eq.s32.totalorder %s17, 0
    %p143 = por %p141, %p142
    %p144 = scmp.ne.s32.totalorder %s132, %s133
    %p145 = scmp.eq.s32.totalorder %s18, 1
    %p146 = por %p144, %p145
    %p148 = scmp.ne.s32.totalorder %s133, %s147
    %p149 = scmp.eq.s32.totalorder %s18, 0
    %p150 = por %p148, %p149
    %s151 = ssub.s32 %s12, %s19
    %p152 = scmp.eq.s32.totalorder %s151, 0
    %s154 = sadd.s32 %s153, 1
    %s155 = scalar_select %p152, %s153, %s154
    %p158 = pneg %p152
    %p159 = scmp.eq.s32.totalorder %s12, 1
    %p160 = por %p158, %p159
    %p161 = scmp.ne.s32.totalorder %s153, %s156
    %p162 = scmp.eq.s32.totalorder %s12, 0
    %p163 = por %p161, %p162
    %p164 = scmp.ne.s32.totalorder %s153, %s156
    %p165 = scmp.eq.s32.totalorder %s17, 1
    %p166 = por %p164, %p165
    %p167 = scmp.ne.s32.totalorder %s156, %s157
    %p168 = scmp.eq.s32.totalorder %s17, 0
    %p169 = por %p167, %p168
    %p170 = scmp.ne.s32.totalorder %s156, %s157
    %p171 = scmp.eq.s32.totalorder %s18, 1
    %p172 = por %p170, %p171
    %p174 = scmp.ne.s32.totalorder %s157, %s173
    %p175 = scmp.eq.s32.totalorder %s18, 0
    %p176 = por %p174, %p175
    %p177 = scmp.le.s32.totalorder 1, %s12
    %p178 = scmp.lt.s32.totalorder %s12, 3
    %p179 = pnand %p177, %p178
    %p180 = pneg %p179
    // Predicated region
    $region9: #{cell_forward.1} parent=5 // pred_check
      _
    $region10: #{cell_forward.1} parent=5 // pred_check_branch
      %182 = sbr.rel (%p179) target = $region12
    $region11: #{cell_forward.1} parent=5 // pred_region
      %s183 = ssub.s32 %s12, 1
      // Predicated region
      $region13: #{cell_forward.1} parent=11 // pred_check
        %p184 = pneg %p59
      $region14: #{cell_forward.1} parent=11 // pred_check_branch
        %186 = sbr.rel (%p184) target = $region16
      $region15: #{cell_forward.1} parent=11 // pred_region
        _
      $region16: #{cell_forward.1} parent=11 // pred_fallthru
        _
      // Predicated region
      $region17: #{cell_forward.1} parent=11 // pred_check
        %p187 = pneg %p80
      $region18: #{cell_forward.1} parent=11 // pred_check_branch
        %189 = sbr.rel (%p187) target = $region20
      $region19: #{cell_forward.1} parent=11 // pred_region
        _
      $region20: #{cell_forward.1} parent=11 // pred_fallthru
        _
      // Predicated region
      $region21: #{cell_forward.1} parent=11 // pred_check
        %p190 = pneg %p101
      $region22: #{cell_forward.1} parent=11 // pred_check_branch
        %192 = sbr.rel (%p190) target = $region24
      $region23: #{cell_forward.1} parent=11 // pred_region
        _
      $region24: #{cell_forward.1} parent=11 // pred_fallthru
        _
      // Predicated region
      $region25: #{cell_forward.1} parent=11 // pred_check
        %p193 = pneg %p122
      $region26: #{cell_forward.1} parent=11 // pred_check_branch
        %195 = sbr.rel (%p193) target = $region28
      $region27: #{cell_forward.1} parent=11 // pred_region
        _
      $region28: #{cell_forward.1} parent=11 // pred_fallthru
        _
      // Predicated region
      $region29: #{cell_forward.1} parent=11 // pred_check
        %p196 = pneg %p143
      $region30: #{cell_forward.1} parent=11 // pred_check_branch
        %198 = sbr.rel (%p196) target = $region32
      $region31: #{cell_forward.1} parent=11 // pred_region
        _
      $region32: #{cell_forward.1} parent=11 // pred_fallthru
        _
    $region12: #{cell_forward.1} parent=5 // pred_fallthru
      _
    %p199 = scmp.lt.s32.totalorder %s12, 2
    // Predicated region
    $region33: #{cell_forward.1} parent=5 // pred_check
      %p200 = pneg %p199
    $region34: #{cell_forward.1} parent=5 // pred_check_branch
      %202 = sbr.rel (%p200) target = $region36
    $region35: #{cell_forward.1} parent=5 // pred_region
      // Predicated region
      $region37: #{cell_forward.1} parent=35 // pred_check
        %p203 = pneg %p32
      $region38: #{cell_forward.1} parent=35 // pred_check_branch
        %205 = sbr.rel (%p203) target = $region40
      $region39: #{cell_forward.1} parent=35 // pred_region
        %p206 = scmp.lt.s32.totalorder %s12, 1
        %s207 = scalar_select %p206, %s12, 1
        %s208 = smul.addr %s207, 2
        %s209 = smul.addr %s208, 8
        %s210 = scalar_lea.vmem %s0, %s209
      $region40: #{cell_forward.1} parent=35 // pred_fallthru
        _
    $region36: #{cell_forward.1} parent=5 // pred_fallthru
      _
    %p211 = scmp.le.s32.totalorder 1, %s12
    %p212 = scmp.lt.s32.totalorder %s12, 3
    %p213 = pnand %p211, %p212
    %p214 = pneg %p213
    // Predicated region
    $region41: #{cell_forward.1} parent=5 // pred_check
      _
    $region42: #{cell_forward.1} parent=5 // pred_check_branch
      %216 = sbr.rel (%p213) target = $region44
    $region43: #{cell_forward.1} parent=5 // pred_region
      %s217 = ssub.s32 %s12, 1
      %p218 = scmp.lt.s32.totalorder %s17, 1
      %s219 = scalar_select %p218, %s17, 1
      %s220 = smul.addr %s219, 2
      %s221 = smul.addr %s220, 8
      %s222 = scalar_lea.vmem %s0, %s221
      %p223 = pneg %p38
      %p224 = pneg %p35
      %p225 = pneg %p59
      %p226 = pneg %p56
      %p227 = pneg %p80
      %p228 = pneg %p77
      %p229 = pneg %p101
      %p230 = pneg %p98
      %p231 = pneg %p122
      %p232 = pneg %p119
      %p233 = pneg %p143
      %p234 = pneg %p140
      %p235 = pneg %p169
      %p236 = pneg %p166
      %p237 = scmp.lt.s32.totalorder %s17, 1
      %s238 = scalar_select %p237, %s17, 1
      %s239 = smul.addr %s238, 2
      %s240 = smul.addr %s239, 8
      %s241 = scalar_lea.vmem %s6, %s240
      %p242 = scmp.lt.s32.totalorder %s17, 1
      %s243 = scalar_select %p242, %s17, 1
      %s244 = smul.addr %s243, 2
      %s245 = smul.addr %s244, 8
      %s246 = scalar_lea.vmem %s0, %s245
      %p247 = scmp.lt.s32.totalorder %s17, 1
      %s248 = scalar_select %p247, %s17, 1
      %s249 = smul.addr %s248, 2
      %s250 = smul.addr %s249, 8
      %s251 = scalar_lea.vmem %s6, %s250
      %v252 = vld [vmem:[%s3] sm:$0x3]
      %v253 = vld [vmem:[%s4] sm:$0x3]
      %v254 = vld [vmem:[%s5] sm:$0x3]
      %255 = vst [vmem:[#allocation2] sm:$0xff] 0.0
      %256 = vst [vmem:[#allocation2 + $0x8] sm:$0xff] 0.0
      %257 = vst [vmem:[#allocation2 + $0x10] sm:$0xff] 0.0
      %258 = vst [vmem:[#allocation2 + $0x18] sm:$0xff] 0.0
      %v259 = vld [vmem:[%s246] sm:$0xff]
      %v260 = vld [vmem:[%s246 + $0x8] sm:$0xff]
      %261 = vst [vmem:[#allocation2 + $0x8] sm:$0xff] %v259
      %262 = vst [vmem:[#allocation2 + $0x10] sm:$0xff] %v260
      %v263 = vld [vmem:[#allocation2] sm:$0xff]
      %v264 = vld [vmem:[#allocation2 + $0x8] sm:$0xff]
      %v265 = vld [vmem:[#allocation2 + $0x10] sm:$0xff]
      %v267 = vlaneseq
      %v268 = vshrl.u32 %v267, 7
      %v269 = vsub.s32 0, %v268
      %v270 = vrot.slane %v253, %v269
      %v271 = vlaneseq
      %v272 = vshrl.u32 %v271, 7
      %v273 = vsub.s32 1, %v272
      %v274 = vrot.slane %v253, %v273
      %275 = vrot.lane.b32.xlu0 %v270, 111
      %v276 = vpop.permute.xlu0 %275
      %277 = vrot.lane.b32.xlu0 %v274, 111
      %v278 = vpop.permute.xlu0 %277
      %vm279 = vcmask 908288
      %v280 = vsel %vm279, %v276, %v278
      %v284 = vmul.f32 %v263, %v276
      %v285 = vmul.f32 %v264, %v280
      %v286 = vmul.f32 %v265, %v278
      %v287 = vmax.f32 %v284, 0.0
      %v288 = vmax.f32 %v285, 0.0
      %v289 = vmax.f32 %v286, 0.0
      %293 = vrot.lane.b32.xlu0 %v287, 17
      %v294 = vpop.permute.xlu0 %293
      %295 = vrot.lane.b32.xlu0 %v288, 17
      %v296 = vpop.permute.xlu0 %295
      %297 = vrot.lane.b32.xlu0 %v289, 17
      %v298 = vpop.permute.xlu0 %297
      %vm299 = vcmask 138240
      %v300 = vsel %vm299, %v294, %v296
      %v301 = vsel %vm299, %v296, %v298
      %304 = vst [vmem:[#allocation3] sm:$0xff] %v300
      %305 = vst [vmem:[#allocation3 + $0x8] sm:$0xff] %v301
      %v306 = vld [vmem:[#allocation2] sm:$0xff]
      %v307 = vld [vmem:[#allocation2 + $0x8] sm:$0xff]
      %v308 = vld [vmem:[#allocation2 + $0x10] sm:$0xff]
      %312 = vrot.lane.b32.xlu0 %v306, 127
      %v313 = vpop.permute.xlu0 %312
      %314 = vrot.lane.b32.xlu0 %v307, 127
      %v315 = vpop.permute.xlu0 %314
      %316 = vrot.lane.b32.xlu0 %v308, 127
      %v317 = vpop.permute.xlu0 %316
      %vm318 = vcmask 1039360
      %v319 = vsel %vm318, %v313, %v315
      %v320 = vsel %vm318, %v315, %v317
      %v324 = vadd.f32 %v284, %v319
      %v325 = vadd.f32 %v285, %v320
      %v326 = vadd.f32 %v286, %v317
      %v327 = vmax.f32 %v306, 0.0
      %v328 = vmax.f32 %v307, 0.0
      %v329 = vmax.f32 %v308, 0.0
      %333 = vrot.lane.b32.xlu0 %v327, 16
      %v334 = vpop.permute.xlu0 %333
      %335 = vrot.lane.b32.xlu0 %v328, 16
      %v336 = vpop.permute.xlu0 %335
      %337 = vrot.lane.b32.xlu0 %v329, 16
      %v338 = vpop.permute.xlu0 %337
      %vm339 = vcmask 130048
      %v340 = vsel %vm339, %v334, %v336
      %v341 = vsel %vm339, %v336, %v338
      %344 = vst [vmem:[#allocation3 + $0x10] sm:$0xff] %v340
      %345 = vst [vmem:[#allocation3 + $0x18] sm:$0xff] %v341
      %v346 = vld [vmem:[#allocation2] sm:$0xff]
      %v347 = vld [vmem:[#allocation2 + $0x8] sm:$0xff]
      %v348 = vld [vmem:[#allocation2 + $0x10] sm:$0xff]
      %v350 = vlaneseq
      %v351 = vshrl.u32 %v350, 7
      %v352 = vsub.s32 0, %v351
      %v353 = vrot.slane %v254, %v352
      %v354 = vlaneseq
      %v355 = vshrl.u32 %v354, 7
      %v356 = vsub.s32 1, %v355
      %v357 = vrot.slane %v254, %v356
      %358 = vrot.lane.b32.xlu0 %v353, 113
      %v359 = vpop.permute.xlu0 %358
      %360 = vrot.lane.b32.xlu0 %v357, 113
      %v361 = vpop.permute.xlu0 %360
      %vm362 = vcmask 924672
      %v363 = vsel %vm362, %v359, %v361
      %v367 = vmul.f32 %v346, %v359
      %v368 = vmul.f32 %v347, %v363
      %v369 = vmul.f32 %v348, %v361
      %373 = vrot.lane.b32.xlu0 %v367, 126
      %v374 = vpop.permute.xlu0 %373
      %375 = vrot.lane.b32.xlu0 %v368, 126
      %v376 = vpop.permute.xlu0 %375
      %377 = vrot.lane.b32.xlu0 %v369, 126
      %v378 = vpop.permute.xlu0 %377
      %vm379 = vcmask 1031168
      %v380 = vsel %vm379, %v374, %v376
      %v381 = vsel %vm379, %v376, %v378
      %v385 = vadd.f32 %v324, %v380
      %v386 = vadd.f32 %v325, %v381
      %v387 = vadd.f32 %v326, %v378
      %v388 = vmax.f32 %v367, 0.0
      %v389 = vmax.f32 %v368, 0.0
      %v390 = vmax.f32 %v369, 0.0
      %394 = vrot.lane.b32.xlu0 %v388, 15
      %v395 = vpop.permute.xlu0 %394
      %396 = vrot.lane.b32.xlu0 %v389, 15
      %v397 = vpop.permute.xlu0 %396
      %398 = vrot.lane.b32.xlu0 %v390, 15
      %v399 = vpop.permute.xlu0 %398
      %vm400 = vcmask 121856
      %v401 = vsel %vm400, %v395, %v397
      %v402 = vsel %vm400, %v397, %v399
      %405 = vst [vmem:[#allocation3 + $0x20] sm:$0xff] %v401
      %406 = vst [vmem:[#allocation3 + $0x28] sm:$0xff] %v402
      %v407 = vld [vmem:[#allocation2] sm:$0xff]
      %v408 = vld [vmem:[#allocation2 + $0x8] sm:$0xff]
      %v409 = vld [vmem:[#allocation2 + $0x10] sm:$0xff]
      %410 = vrot.lane.b32.xlu0 %v270, 127
      %v411 = vpop.permute.xlu0 %410
      %412 = vrot.lane.b32.xlu0 %v274, 127
      %v413 = vpop.permute.xlu0 %412
      %v414 = vsel %vm318, %v411, %v413
      %v418 = vmul.f32 %v407, %v411
      %v419 = vmul.f32 %v408, %v414
      %v420 = vmul.f32 %v409, %v413
      %424 = vrot.lane.b32.xlu0 %v418, 112
      %v425 = vpop.permute.xlu0 %424
      %426 = vrot.lane.b32.xlu0 %v419, 112
      %v427 = vpop.permute.xlu0 %426
      %428 = vrot.lane.b32.xlu0 %v420, 112
      %v429 = vpop.permute.xlu0 %428
      %vm430 = vcmask 916480
      %v431 = vsel %vm430, %v425, %v427
      %v432 = vsel %vm430, %v427, %v429
      %v436 = vadd.f32 %v385, %v431
      %v437 = vadd.f32 %v386, %v432
      %v438 = vadd.f32 %v387, %v429
      %v439 = vmax.f32 %v418, 0.0
      %v440 = vmax.f32 %v419, 0.0
      %v441 = vmax.f32 %v420, 0.0
      %445 = vrot.lane.b32.xlu0 %v439, 1
      %v446 = vpop.permute.xlu0 %445
      %447 = vrot.lane.b32.xlu0 %v440, 1
      %v448 = vpop.permute.xlu0 %447
      %449 = vrot.lane.b32.xlu0 %v441, 1
      %v450 = vpop.permute.xlu0 %449
      %vm451 = vcmask 7168
      %v452 = vsel %vm451, %v446, %v448
      %v453 = vsel %vm451, %v448, %v450
      %456 = vst [vmem:[#allocation3 + $0x30] sm:$0xff] %v452
      %457 = vst [vmem:[#allocation3 + $0x38] sm:$0xff] %v453
      %v458 = vld [vmem:[#allocation2 + $0x8] sm:$0xff]
      %v459 = vld [vmem:[#allocation2 + $0x10] sm:$0xff]
      %462 = vrot.lane.b32.xlu0 %v458, 111
      %v463 = vpop.permute.xlu0 %462
      %464 = vrot.lane.b32.xlu0 %v459, 111
      %v465 = vpop.permute.xlu0 %464
      %v466 = vsel %vm279, %v463, %v465
      %v470 = vadd.f32 %v436, %v463
      %v471 = vadd.f32 %v437, %v466
      %v472 = vadd.f32 %v438, %v465
      %v473 = vmax.f32 %v458, 0.0
      %v474 = vmax.f32 %v459, 0.0
      %475 = vst [vmem:[#allocation3 + $0x40] sm:$0xff] %v473
      %476 = vst [vmem:[#allocation3 + $0x48] sm:$0xff] %v474
      %v477 = vld [vmem:[#allocation2 + $0x8] sm:$0xff]
      %v478 = vld [vmem:[#allocation2 + $0x10] sm:$0xff]
      %v479 = vld [vmem:[#allocation2 + $0x18] sm:$0xff]
      %480 = vrot.lane.b32.xlu0 %v353, 1
      %v481 = vpop.permute.xlu0 %480
      %482 = vrot.lane.b32.xlu0 %v357, 1
      %v483 = vpop.permute.xlu0 %482
      %v484 = vsel %vm451, %v481, %v483
      %v488 = vmul.f32 %v477, %v481
      %v489 = vmul.f32 %v478, %v484
      %v490 = vmul.f32 %v479, %v483
      %494 = vrot.lane.b32.xlu0 %v488, 110
      %v495 = vpop.permute.xlu0 %494
      %496 = vrot.lane.b32.xlu0 %v489, 110
      %v497 = vpop.permute.xlu0 %496
      %498 = vrot.lane.b32.xlu0 %v490, 110
      %v499 = vpop.permute.xlu0 %498
      %vm500 = vcmask 900096
      %v501 = vsel %vm500, %v495, %v497
      %v502 = vsel %vm500, %v497, %v499
      %v506 = vadd.f32 %v470, %v495
      %v507 = vadd.f32 %v471, %v501
      %v508 = vadd.f32 %v472, %v502
      %v509 = vmax.f32 %v488, 0.0
      %v510 = vmax.f32 %v489, 0.0
      %v511 = vmax.f32 %v490, 0.0
      %515 = vrot.lane.b32.xlu0 %v509, 127
      %v516 = vpop.permute.xlu0 %515
      %517 = vrot.lane.b32.xlu0 %v510, 127
      %v518 = vpop.permute.xlu0 %517
      %519 = vrot.lane.b32.xlu0 %v511, 127
      %v520 = vpop.permute.xlu0 %519
      %v521 = vsel %vm318, %v516, %v518
      %v522 = vsel %vm318, %v518, %v520
      %525 = vst [vmem:[#allocation3 + $0x50] sm:$0xff] %v521
      %526 = vst [vmem:[#allocation3 + $0x58] sm:$0xff] %v522
      %v527 = vld [vmem:[#allocation2 + $0x8] sm:$0xff]
      %v528 = vld [vmem:[#allocation2 + $0x10] sm:$0xff]
      %v529 = vld [vmem:[#allocation2 + $0x18] sm:$0xff]
      %530 = vrot.lane.b32.xlu0 %v270, 15
      %v531 = vpop.permute.xlu0 %530
      %532 = vrot.lane.b32.xlu0 %v274, 15
      %v533 = vpop.permute.xlu0 %532
      %v534 = vsel %vm400, %v531, %v533
      %v538 = vmul.f32 %v527, %v531
      %v539 = vmul.f32 %v528, %v534
      %v540 = vmul.f32 %v529, %v533
      %544 = vrot.lane.b32.xlu0 %v538, 96
      %v545 = vpop.permute.xlu0 %544
      %546 = vrot.lane.b32.xlu0 %v539, 96
      %v547 = vpop.permute.xlu0 %546
      %548 = vrot.lane.b32.xlu0 %v540, 96
      %v549 = vpop.permute.xlu0 %548
      %vm550 = vcmask 785408
      %v551 = vsel %vm550, %v545, %v547
      %v552 = vsel %vm550, %v547, %v549
      %v556 = vadd.f32 %v506, %v545
      %v557 = vadd.f32 %v507, %v551
      %v558 = vadd.f32 %v508, %v552
      %v559 = vmax.f32 %v538, 0.0
      %v560 = vmax.f32 %v539, 0.0
      %v561 = vmax.f32 %v540, 0.0
      %565 = vrot.lane.b32.xlu0 %v559, 113
      %v566 = vpop.permute.xlu0 %565
      %567 = vrot.lane.b32.xlu0 %v560, 113
      %v568 = vpop.permute.xlu0 %567
      %569 = vrot.lane.b32.xlu0 %v561, 113
      %v570 = vpop.permute.xlu0 %569
      %v571 = vsel %vm362, %v566, %v568
      %v572 = vsel %vm362, %v568, %v570
      %575 = vst [vmem:[#allocation3 + $0x60] sm:$0xff] %v571
      %576 = vst [vmem:[#allocation3 + $0x68] sm:$0xff] %v572
      %v577 = vld [vmem:[#allocation2 + $0x8] sm:$0xff]
      %v578 = vld [vmem:[#allocation2 + $0x10] sm:$0xff]
      %v579 = vld [vmem:[#allocation2 + $0x18] sm:$0xff]
      %583 = vrot.lane.b32.xlu0 %v577, 95
      %v584 = vpop.permute.xlu0 %583
      %585 = vrot.lane.b32.xlu0 %v578, 95
      %v586 = vpop.permute.xlu0 %585
      %587 = vrot.lane.b32.xlu0 %v579, 95
      %v588 = vpop.permute.xlu0 %587
      %vm589 = vcmask 777216
      %v590 = vsel %vm589, %v584, %v586
      %v591 = vsel %vm589, %v586, %v588
      %v595 = vadd.f32 %v556, %v584
      %v596 = vadd.f32 %v557, %v590
      %v597 = vadd.f32 %v558, %v591
      %v598 = vmax.f32 %v577, 0.0
      %v599 = vmax.f32 %v578, 0.0
      %v600 = vmax.f32 %v579, 0.0
      %604 = vrot.lane.b32.xlu0 %v598, 112
      %v605 = vpop.permute.xlu0 %604
      %606 = vrot.lane.b32.xlu0 %v599, 112
      %v607 = vpop.permute.xlu0 %606
      %608 = vrot.lane.b32.xlu0 %v600, 112
      %v609 = vpop.permute.xlu0 %608
      %v610 = vsel %vm430, %v605, %v607
      %v611 = vsel %vm430, %v607, %v609
      %614 = vst [vmem:[#allocation3 + $0x70] sm:$0xff] %v610
      %615 = vst [vmem:[#allocation3 + $0x78] sm:$0xff] %v611
      %v616 = vld [vmem:[#allocation2 + $0x8] sm:$0xff]
      %v617 = vld [vmem:[#allocation2 + $0x10] sm:$0xff]
      %v618 = vld [vmem:[#allocation2 + $0x18] sm:$0xff]
      %619 = vrot.lane.b32.xlu0 %v353, 17
      %v620 = vpop.permute.xlu0 %619
      %621 = vrot.lane.b32.xlu0 %v357, 17
      %v622 = vpop.permute.xlu0 %621
      %v623 = vsel %vm299, %v620, %v622
      %v627 = vmul.f32 %v616, %v620
      %v628 = vmul.f32 %v617, %v623
      %v629 = vmul.f32 %v618, %v622
      %633 = vrot.lane.b32.xlu0 %v627, 94
      %v634 = vpop.permute.xlu0 %633
      %635 = vrot.lane.b32.xlu0 %v628, 94
      %v636 = vpop.permute.xlu0 %635
      %637 = vrot.lane.b32.xlu0 %v629, 94
      %v638 = vpop.permute.xlu0 %637
      %vm639 = vcmask 769024
      %v640 = vsel %vm639, %v634, %v636
      %v641 = vsel %vm639, %v636, %v638
      %v645 = vadd.f32 %v595, %v634
      %v646 = vadd.f32 %v596, %v640
      %v647 = vadd.f32 %v597, %v641
      %v648 = vmax.f32 %v627, 0.0
      %v649 = vmax.f32 %v628, 0.0
      %v650 = vmax.f32 %v629, 0.0
      %654 = vrot.lane.b32.xlu0 %v648, 111
      %v655 = vpop.permute.xlu0 %654
      %656 = vrot.lane.b32.xlu0 %v649, 111
      %v657 = vpop.permute.xlu0 %656
      %658 = vrot.lane.b32.xlu0 %v650, 111
      %v659 = vpop.permute.xlu0 %658
      %v660 = vsel %vm279, %v655, %v657
      %v661 = vsel %vm279, %v657, %v659
      %664 = vst [vmem:[#allocation3 + $0x80] sm:$0xff] %v660
      %665 = vst [vmem:[#allocation3 + $0x88] sm:$0xff] %v661
      %v666 = vmul.f32 %v259, 0.2
      %v667 = vmul.f32 %v260, 0.2
      %v669 = vlaneseq
      %v670 = vshrl.u32 %v669, 7
      %v671 = vsub.s32 0, %v670
      %v672 = vrot.slane %v252, %v671
      %v673 = vlaneseq
      %v674 = vshrl.u32 %v673, 7
      %v675 = vsub.s32 1, %v674
      %v676 = vrot.slane %v252, %v675
      %677 = vrot.lane.b32.xlu0 %v672, 111
      %v678 = vpop.permute.xlu0 %677
      %679 = vrot.lane.b32.xlu0 %v676, 111
      %v680 = vpop.permute.xlu0 %679
      %v681 = vsel %vm279, %v678, %v680
      %v685 = vmul.f32 %v645, %v678
      %v686 = vmul.f32 %v646, %v681
      %v687 = vmul.f32 %v647, %v680
      %691 = vrot.lane.b32.xlu0 %v685, 17
      %v692 = vpop.permute.xlu0 %691
      %693 = vrot.lane.b32.xlu0 %v686, 17
      %v694 = vpop.permute.xlu0 %693
      %695 = vrot.lane.b32.xlu0 %v687, 17
      %v696 = vpop.permute.xlu0 %695
      %v697 = vsel %vm299, %v692, %v694
      %v698 = vsel %vm299, %v694, %v696
      %v701 = vadd.f32 %v666, %v697
      %v702 = vadd.f32 %v667, %v698
      %v703 = vld [vmem:[%s1] sm:$0xff]
      %v704 = vld [vmem:[%s1 + $0x8] sm:$0xff]
      %v705 = vld [vmem:[%s1 + $0x10] sm:$0xff]
      %v706 = vld [vmem:[#allocation3] sm:$0xff]
      %v707 = vld [vmem:[#allocation3 + $0x8] sm:$0xff]
      %v708 = vld [vmem:[#allocation3 + $0x10] sm:$0xff]
      %v709 = vld [vmem:[#allocation3 + $0x18] sm:$0xff]
      %v710 = vld [vmem:[#allocation3 + $0x20] sm:$0xff]
      %v711 = vld [vmem:[#allocation3 + $0x28] sm:$0xff]
      %v712 = vld [vmem:[#allocation3 + $0x30] sm:$0xff]
      %v713 = vld [vmem:[#allocation3 + $0x38] sm:$0xff]
      %v714 = vld [vmem:[#allocation3 + $0x40] sm:$0xff]
      %v715 = vld [vmem:[#allocation3 + $0x48] sm:$0xff]
      %v716 = vld [vmem:[#allocation3 + $0x50] sm:$0xff]
      %v717 = vld [vmem:[#allocation3 + $0x58] sm:$0xff]
      %v718 = vld [vmem:[#allocation3 + $0x60] sm:$0xff]
      %v719 = vld [vmem:[#allocation3 + $0x68] sm:$0xff]
      %v720 = vld [vmem:[#allocation3 + $0x70] sm:$0xff]
      %v721 = vld [vmem:[#allocation3 + $0x78] sm:$0xff]
      %v722 = vld [vmem:[#allocation3 + $0x80] sm:$0xff]
      %v723 = vld [vmem:[#allocation3 + $0x88] sm:$0xff]
      %v724 = vld [vmem:[%s2] sm:$0xff]
      %v725 = vld [vmem:[%s2 + $0x8] sm:$0xff]
      %v726 = vld [vmem:[%s2 + $0x10] sm:$0xff]
      %728 = vset.pattern.permute.xlu0 0
      %729 = vperm.xlu0 %728, %v724
      %v730 = vpop.permute.xlu0 %729
      %733 = vset.pattern.permute.xlu0 0
      %734 = vperm.xlu0 %733, %v725
      %v735 = vpop.permute.xlu0 %734
      %738 = vset.pattern.permute.xlu0 0
      %739 = vperm.xlu0 %738, %v726
      %v740 = vpop.permute.xlu0 %739
      %vm742 = vcmask 588800
      %v744 = vsel %vm742, %v703, 0
      %v747 = vsel %vm742, %v704, 0
      %v750 = vsel %vm742, %v705, 0
      %752 = vmatprep.subr.mxu0 %v707
      %753 = vmatpush1.msra.mxu0 %v706
      %754 = vmatprep.subr.mxu0 %v709
      %755 = vmatpush1.msra.mxu0 %v708
      %756 = vmatprep.subr.mxu0 %v711
      %757 = vmatpush1.msra.mxu0 %v710
      %758 = vmatprep.subr.mxu0 %v713
      %759 = vmatpush1.msra.mxu0 %v712
      %760 = vmatprep.subr.mxu0 %v715
      %761 = vmatpush1.msra.mxu0 %v714
      %762 = vmatprep.subr.mxu0 %v717
      %763 = vmatpush1.msra.mxu0 %v716
      %764 = vmatprep.subr.mxu0 %v719
      %765 = vmatpush1.msra.mxu0 %v718
      %766 = vmatprep.subr.mxu0 %v721
      %767 = vmatpush1.msra.mxu0 %v720
      %768 = vmatprep.subr.mxu0 %v723
      %769 = vmatpush1.msra.mxu0 %v722
      %770 = vmatprep.subr.mxu0 0.0
      %771 = vmatpush1.msra.mxu0 0.0
      %772 = vmatprep.subr.mxu0 0.0
      %773 = vmatpush1.msra.mxu0 0.0
      %774 = vmatprep.subr.mxu0 0.0
      %775 = vmatpush1.msra.mxu0 0.0
      %776 = vmatprep.subr.mxu0 0.0
      %777 = vmatpush1.msra.mxu0 0.0
      %778 = vmatprep.subr.mxu0 0.0
      %779 = vmatpush1.msra.mxu0 0.0
      %780 = vmatprep.subr.mxu0 0.0
      %781 = vmatpush1.msra.mxu0 0.0
      %782 = vmatprep.subr.mxu0 0.0
      %783 = vmatpush1.msra.mxu0 0.0
      %784 = vmatprep.subr.mxu0 0.0
      %785 = vmatpush1.msra.mxu0 0.0
      %786 = vmatprep.subr.mxu0 0.0
      %787 = vmatpush1.msra.mxu0 0.0
      %788 = vmatprep.subr.mxu0 0.0
      %789 = vmatpush1.msra.mxu0 0.0
      %790 = vmatprep.subr.mxu0 0.0
      %791 = vmatpush1.msra.mxu0 0.0
      %792 = vmatprep.subr.mxu0 0.0
      %793 = vmatpush1.msra.mxu0 0.0
      %794 = vmatprep.subr.mxu0 0.0
      %795 = vmatpush1.msra.mxu0 0.0
      %796 = vmatprep.subr.mxu0 0.0
      %797 = vmatpush1.msra.mxu0 0.0
      %798 = vmatprep.subr.mxu0 0.0
      %799 = vmatpush1.msra.mxu0 0.0
      %800 = vmatprep.subr.mxu0 0.0
      %801 = vmatpush1.msra.mxu0 0.0
      %802 = vmatprep.subr.mxu0 0.0
      %803 = vmatpush1.msra.mxu0 0.0
      %804 = vmatprep.subr.mxu0 0.0
      %805 = vmatpush1.msra.mxu0 0.0
      %806 = vmatprep.subr.mxu0 0.0
      %807 = vmatpush1.msra.mxu0 0.0
      %808 = vmatprep.subr.mxu0 0.0
      %809 = vmatpush1.msra.mxu0 0.0
      %810 = vmatprep.subr.mxu0 0.0
      %811 = vmatpush1.msra.mxu0 0.0
      %812 = vmatprep.subr.mxu0 0.0
      %813 = vmatpush1.msra.mxu0 0.0
      %814 = vmatprep.subr.mxu0 0.0
      %815 = vmatpush1.msra.mxu0 0.0
      %816 = vmatprep.mubr.f32.mxu0 0.0
      %817 = vmatmul.mubr.f32.gmra.mrb[0].mxu0 %v744
      %v818 = vpop.f32.mrb[0].mxu0
      %v819 = vadd.f32 %v730, %v818
      %v820 = vpop.f32.mrb[0].mxu0
      %v821 = vadd.f32 %v730, %v820
      %822 = vmatprep.mubr.f32.mxu0 0.0
      %823 = vmatmul.mubr.f32.gmra.mrb[0].mxu0 %v747
      %v824 = vpop.f32.mrb[0].mxu0
      %v825 = vadd.f32 %v735, %v824
      %v826 = vpop.f32.mrb[0].mxu0
      %v827 = vadd.f32 %v735, %v826
      %828 = vmatprep.mubr.f32.mxu0 0.0
      %829 = vmatmul.mubr.f32.gmra.mrb[0].mxu0 %v750
      %v830 = vpop.f32.mrb[0].mxu0
      %v831 = vadd.f32 %v740, %v830
      %v832 = vpop.f32.mrb[0].mxu0
      %v833 = vadd.f32 %v740, %v832
      %834 = vdwg.mxu0
      %v835 = vadd.f32 %v701, %v819
      %v836 = vadd.f32 %v702, %v821
      %v837 = vadd.f32 %v701, %v825
      %v838 = vadd.f32 %v702, %v827
      %v839 = vadd.f32 %v701, %v831
      %v840 = vadd.f32 %v702, %v833
      %841 = vst [vmem:[#allocation2 + $0x8] sm:$0xff] %v835
      %842 = vst [vmem:[#allocation2 + $0x10] sm:$0xff] %v836
      %v843 = vld [vmem:[#allocation2] sm:$0xff]
      %v844 = vld [vmem:[#allocation2 + $0x8] sm:$0xff]
      %v845 = vld [vmem:[#allocation2 + $0x10] sm:$0xff]
      %v846 = vmul.f32 %v843, %v276
      %v847 = vmul.f32 %v844, %v280
      %v848 = vmul.f32 %v845, %v278
      %v849 = vmax.f32 %v846, 0.0
      %v850 = vmax.f32 %v847, 0.0
      %v851 = vmax.f32 %v848, 0.0
      %855 = vrot.lane.b32.xlu0 %v849, 17
      %v856 = vpop.permute.xlu0 %855
      %857 = vrot.lane.b32.xlu0 %v850, 17
      %v858 = vpop.permute.xlu0 %857
      %859 = vrot.lane.b32.xlu0 %v851, 17
      %v860 = vpop.permute.xlu0 %859
      %v861 = vsel %vm299, %v856, %v858
      %v862 = vsel %vm299, %v858, %v860
      %865 = vst [vmem:[#allocation3] sm:$0xff] %v861
      %866 = vst [vmem:[#allocation3 + $0x8] sm:$0xff] %v862
      %v867 = vld [vmem:[#allocation2] sm:$0xff]
      %v868 = vld [vmem:[#allocation2 + $0x8] sm:$0xff]
      %v869 = vld [vmem:[#allocation2 + $0x10] sm:$0xff]
      %873 = vrot.lane.b32.xlu0 %v867, 127
      %v874 = vpop.permute.xlu0 %873
      %875 = vrot.lane.b32.xlu0 %v868, 127
      %v876 = vpop.permute.xlu0 %875
      %877 = vrot.lane.b32.xlu0 %v869, 127
      %v878 = vpop.permute.xlu0 %877
      %v879 = vsel %vm318, %v874, %v876
      %v880 = vsel %vm318, %v876, %v878
      %v884 = vadd.f32 %v846, %v879
      %v885 = vadd.f32 %v847, %v880
      %v886 = vadd.f32 %v848, %v878
      %v887 = vmax.f32 %v867, 0.0
      %v888 = vmax.f32 %v868, 0.0
      %v889 = vmax.f32 %v869, 0.0
      %893 = vrot.lane.b32.xlu0 %v887, 16
      %v894 = vpop.permute.xlu0 %893
      %895 = vrot.lane.b32.xlu0 %v888, 16
      %v896 = vpop.permute.xlu0 %895
      %897 = vrot.lane.b32.xlu0 %v889, 16
      %v898 = vpop.permute.xlu0 %897
      %v899 = vsel %vm339, %v894, %v896
      %v900 = vsel %vm339, %v896, %v898
      %903 = vst [vmem:[#allocation3 + $0x10] sm:$0xff] %v899
      %904 = vst [vmem:[#allocation3 + $0x18] sm:$0xff] %v900
      %v905 = vld [vmem:[#allocation2] sm:$0xff]
      %v906 = vld [vmem:[#allocation2 + $0x8] sm:$0xff]
      %v907 = vld [vmem:[#allocation2 + $0x10] sm:$0xff]
      %v908 = vmul.f32 %v905, %v359
      %v909 = vmul.f32 %v906, %v363
      %v910 = vmul.f32 %v907, %v361
      %914 = vrot.lane.b32.xlu0 %v908, 126
      %v915 = vpop.permute.xlu0 %914
      %916 = vrot.lane.b32.xlu0 %v909, 126
      %v917 = vpop.permute.xlu0 %916
      %918 = vrot.lane.b32.xlu0 %v910, 126
      %v919 = vpop.permute.xlu0 %918
      %v920 = vsel %vm379, %v915, %v917
      %v921 = vsel %vm379, %v917, %v919
      %v925 = vadd.f32 %v884, %v920
      %v926 = vadd.f32 %v885, %v921
      %v927 = vadd.f32 %v886, %v919
      %v928 = vmax.f32 %v908, 0.0
      %v929 = vmax.f32 %v909, 0.0
      %v930 = vmax.f32 %v910, 0.0
      %934 = vrot.lane.b32.xlu0 %v928, 15
      %v935 = vpop.permute.xlu0 %934
      %936 = vrot.lane.b32.xlu0 %v929, 15
      %v937 = vpop.permute.xlu0 %936
      %938 = vrot.lane.b32.xlu0 %v930, 15
      %v939 = vpop.permute.xlu0 %938
      %v940 = vsel %vm400, %v935, %v937
      %v941 = vsel %vm400, %v937, %v939
      %944 = vst [vmem:[#allocation3 + $0x20] sm:$0xff] %v940
      %945 = vst [vmem:[#allocation3 + $0x28] sm:$0xff] %v941
      %v946 = vld [vmem:[#allocation2] sm:$0xff]
      %v947 = vld [vmem:[#allocation2 + $0x8] sm:$0xff]
      %v948 = vld [vmem:[#allocation2 + $0x10] sm:$0xff]
      %v949 = vmul.f32 %v946, %v411
      %v950 = vmul.f32 %v947, %v414
      %v951 = vmul.f32 %v948, %v413
      %955 = vrot.lane.b32.xlu0 %v949, 112
      %v956 = vpop.permute.xlu0 %955
      %957 = vrot.lane.b32.xlu0 %v950, 112
      %v958 = vpop.permute.xlu0 %957
      %959 = vrot.lane.b32.xlu0 %v951, 112
      %v960 = vpop.permute.xlu0 %959
      %v961 = vsel %vm430, %v956, %v958
      %v962 = vsel %vm430, %v958, %v960
      %v966 = vadd.f32 %v925, %v961
      %v967 = vadd.f32 %v926, %v962
      %v968 = vadd.f32 %v927, %v960
      %v969 = vmax.f32 %v949, 0.0
      %v970 = vmax.f32 %v950, 0.0
      %v971 = vmax.f32 %v951, 0.0
      %975 = vrot.lane.b32.xlu0 %v969, 1
      %v976 = vpop.permute.xlu0 %975
      %977 = vrot.lane.b32.xlu0 %v970, 1
      %v978 = vpop.permute.xlu0 %977
      %979 = vrot.lane.b32.xlu0 %v971, 1
      %v980 = vpop.permute.xlu0 %979
      %v981 = vsel %vm451, %v976, %v978
      %v982 = vsel %vm451, %v978, %v980
      %985 = vst [vmem:[#allocation3 + $0x30] sm:$0xff] %v981
      %986 = vst [vmem:[#allocation3 + $0x38] sm:$0xff] %v982
      %v987 = vld [vmem:[#allocation2 + $0x8] sm:$0xff]
      %v988 = vld [vmem:[#allocation2 + $0x10] sm:$0xff]
      %991 = vrot.lane.b32.xlu0 %v987, 111
      %v992 = vpop.permute.xlu0 %991
      %993 = vrot.lane.b32.xlu0 %v988, 111
      %v994 = vpop.permute.xlu0 %993
      %v995 = vsel %vm279, %v992, %v994
      %v999 = vadd.f32 %v966, %v992
      %v1000 = vadd.f32 %v967, %v995
      %v1001 = vadd.f32 %v968, %v994
      %v1002 = vmax.f32 %v987, 0.0
      %v1003 = vmax.f32 %v988, 0.0
      %1004 = vst [vmem:[#allocation3 + $0x40] sm:$0xff] %v1002
      %1005 = vst [vmem:[#allocation3 + $0x48] sm:$0xff] %v1003
      %v1006 = vld [vmem:[#allocation2 + $0x8] sm:$0xff]
      %v1007 = vld [vmem:[#allocation2 + $0x10] sm:$0xff]
      %v1008 = vld [vmem:[#allocation2 + $0x18] sm:$0xff]
      %v1009 = vmul.f32 %v1006, %v481
      %v1010 = vmul.f32 %v1007, %v484
      %v1011 = vmul.f32 %v1008, %v483
      %1015 = vrot.lane.b32.xlu0 %v1009, 110
      %v1016 = vpop.permute.xlu0 %1015
      %1017 = vrot.lane.b32.xlu0 %v1010, 110
      %v1018 = vpop.permute.xlu0 %1017
      %1019 = vrot.lane.b32.xlu0 %v1011, 110
      %v1020 = vpop.permute.xlu0 %1019
      %v1021 = vsel %vm500, %v1016, %v1018
      %v1022 = vsel %vm500, %v1018, %v1020
      %v1026 = vadd.f32 %v999, %v1016
      %v1027 = vadd.f32 %v1000, %v1021
      %v1028 = vadd.f32 %v1001, %v1022
      %v1029 = vmax.f32 %v1009, 0.0
      %v1030 = vmax.f32 %v1010, 0.0
      %v1031 = vmax.f32 %v1011, 0.0
      %1035 = vrot.lane.b32.xlu0 %v1029, 127
      %v1036 = vpop.permute.xlu0 %1035
      %1037 = vrot.lane.b32.xlu0 %v1030, 127
      %v1038 = vpop.permute.xlu0 %1037
      %1039 = vrot.lane.b32.xlu0 %v1031, 127
      %v1040 = vpop.permute.xlu0 %1039
      %v1041 = vsel %vm318, %v1036, %v1038
      %v1042 = vsel %vm318, %v1038, %v1040
      %1045 = vst [vmem:[#allocation3 + $0x50] sm:$0xff] %v1041
      %1046 = vst [vmem:[#allocation3 + $0x58] sm:$0xff] %v1042
      %v1047 = vld [vmem:[#allocation2 + $0x8] sm:$0xff]
      %v1048 = vld [vmem:[#allocation2 + $0x10] sm:$0xff]
      %v1049 = vld [vmem:[#allocation2 + $0x18] sm:$0xff]
      %v1050 = vmul.f32 %v1047, %v531
      %v1051 = vmul.f32 %v1048, %v534
      %v1052 = vmul.f32 %v1049, %v533
      %1056 = vrot.lane.b32.xlu0 %v1050, 96
      %v1057 = vpop.permute.xlu0 %1056
      %1058 = vrot.lane.b32.xlu0 %v1051, 96
      %v1059 = vpop.permute.xlu0 %1058
      %1060 = vrot.lane.b32.xlu0 %v1052, 96
      %v1061 = vpop.permute.xlu0 %1060
      %v1062 = vsel %vm550, %v1057, %v1059
      %v1063 = vsel %vm550, %v1059, %v1061
      %v1067 = vadd.f32 %v1026, %v1057
      %v1068 = vadd.f32 %v1027, %v1062
      %v1069 = vadd.f32 %v1028, %v1063
      %v1070 = vmax.f32 %v1050, 0.0
      %v1071 = vmax.f32 %v1051, 0.0
      %v1072 = vmax.f32 %v1052, 0.0
      %1076 = vrot.lane.b32.xlu0 %v1070, 113
      %v1077 = vpop.permute.xlu0 %1076
      %1078 = vrot.lane.b32.xlu0 %v1071, 113
      %v1079 = vpop.permute.xlu0 %1078
      %1080 = vrot.lane.b32.xlu0 %v1072, 113
      %v1081 = vpop.permute.xlu0 %1080
      %v1082 = vsel %vm362, %v1077, %v1079
      %v1083 = vsel %vm362, %v1079, %v1081
      %1086 = vst [vmem:[#allocation3 + $0x60] sm:$0xff] %v1082
      %1087 = vst [vmem:[#allocation3 + $0x68] sm:$0xff] %v1083
      %v1088 = vld [vmem:[#allocation2 + $0x8] sm:$0xff]
      %v1089 = vld [vmem:[#allocation2 + $0x10] sm:$0xff]
      %v1090 = vld [vmem:[#allocation2 + $0x18] sm:$0xff]
      %1094 = vrot.lane.b32.xlu0 %v1088, 95
      %v1095 = vpop.permute.xlu0 %1094
      %1096 = vrot.lane.b32.xlu0 %v1089, 95
      %v1097 = vpop.permute.xlu0 %1096
      %1098 = vrot.lane.b32.xlu0 %v1090, 95
      %v1099 = vpop.permute.xlu0 %1098
      %v1100 = vsel %vm589, %v1095, %v1097
      %v1101 = vsel %vm589, %v1097, %v1099
      %v1105 = vadd.f32 %v1067, %v1095
      %v1106 = vadd.f32 %v1068, %v1100
      %v1107 = vadd.f32 %v1069, %v1101
      %v1108 = vmax.f32 %v1088, 0.0
      %v1109 = vmax.f32 %v1089, 0.0
      %v1110 = vmax.f32 %v1090, 0.0
      %1114 = vrot.lane.b32.xlu0 %v1108, 112
      %v1115 = vpop.permute.xlu0 %1114
      %1116 = vrot.lane.b32.xlu0 %v1109, 112
      %v1117 = vpop.permute.xlu0 %1116
      %1118 = vrot.lane.b32.xlu0 %v1110, 112
      %v1119 = vpop.permute.xlu0 %1118
      %v1120 = vsel %vm430, %v1115, %v1117
      %v1121 = vsel %vm430, %v1117, %v1119
      %1124 = vst [vmem:[#allocation3 + $0x70] sm:$0xff] %v1120
      %1125 = vst [vmem:[#allocation3 + $0x78] sm:$0xff] %v1121
      %v1126 = vld [vmem:[#allocation2 + $0x8] sm:$0xff]
      %v1127 = vld [vmem:[#allocation2 + $0x10] sm:$0xff]
      %v1128 = vld [vmem:[#allocation2 + $0x18] sm:$0xff]
      %v1129 = vmul.f32 %v1126, %v620
      %v1130 = vmul.f32 %v1127, %v623
      %v1131 = vmul.f32 %v1128, %v622
      %1135 = vrot.lane.b32.xlu0 %v1129, 94
      %v1136 = vpop.permute.xlu0 %1135
      %1137 = vrot.lane.b32.xlu0 %v1130, 94
      %v1138 = vpop.permute.xlu0 %1137
      %1139 = vrot.lane.b32.xlu0 %v1131, 94
      %v1140 = vpop.permute.xlu0 %1139
      %v1141 = vsel %vm639, %v1136, %v1138
      %v1142 = vsel %vm639, %v1138, %v1140
      %v1146 = vadd.f32 %v1105, %v1136
      %v1147 = vadd.f32 %v1106, %v1141
      %v1148 = vadd.f32 %v1107, %v1142
      %v1149 = vmax.f32 %v1129, 0.0
      %v1150 = vmax.f32 %v1130, 0.0
      %v1151 = vmax.f32 %v1131, 0.0
      %1155 = vrot.lane.b32.xlu0 %v1149, 111
      %v1156 = vpop.permute.xlu0 %1155
      %1157 = vrot.lane.b32.xlu0 %v1150, 111
      %v1158 = vpop.permute.xlu0 %1157
      %1159 = vrot.lane.b32.xlu0 %v1151, 111
      %v1160 = vpop.permute.xlu0 %1159
      %v1161 = vsel %vm279, %v1156, %v1158
      %v1162 = vsel %vm279, %v1158, %v1160
      %1165 = vst [vmem:[#allocation3 + $0x80] sm:$0xff] %v1161
      %1166 = vst [vmem:[#allocation3 + $0x88] sm:$0xff] %v1162
      %v1167 = vmul.f32 %v835, 0.2
      %v1168 = vmul.f32 %v836, 0.2
      %v1169 = vmul.f32 %v1146, %v678
      %v1170 = vmul.f32 %v1147, %v681
      %v1171 = vmul.f32 %v1148, %v680
      %1175 = vrot.lane.b32.xlu0 %v1169, 17
      %v1176 = vpop.permute.xlu0 %1175
      %1177 = vrot.lane.b32.xlu0 %v1170, 17
      %v1178 = vpop.permute.xlu0 %1177
      %1179 = vrot.lane.b32.xlu0 %v1171, 17
      %v1180 = vpop.permute.xlu0 %1179
      %v1181 = vsel %vm299, %v1176, %v1178
      %v1182 = vsel %vm299, %v1178, %v1180
      %v1185 = vadd.f32 %v1167, %v1181
      %v1186 = vadd.f32 %v1168, %v1182
      %v1187 = vld [vmem:[%s1 + $0x18] sm:$0xff]
      %v1188 = vld [vmem:[%s1 + $0x20] sm:$0xff]
      %v1189 = vld [vmem:[#allocation3] sm:$0xff]
      %v1190 = vld [vmem:[#allocation3 + $0x8] sm:$0xff]
      %v1191 = vld [vmem:[#allocation3 + $0x10] sm:$0xff]
      %v1192 = vld [vmem:[#allocation3 + $0x18] sm:$0xff]
      %v1193 = vld [vmem:[#allocation3 + $0x20] sm:$0xff]
      %v1194 = vld [vmem:[#allocation3 + $0x28] sm:$0xff]
      %v1195 = vld [vmem:[#allocation3 + $0x30] sm:$0xff]
      %v1196 = vld [vmem:[#allocation3 + $0x38] sm:$0xff]
      %v1197 = vld [vmem:[#allocation3 + $0x40] sm:$0xff]
      %v1198 = vld [vmem:[#allocation3 + $0x48] sm:$0xff]
      %v1199 = vld [vmem:[#allocation3 + $0x50] sm:$0xff]
      %v1200 = vld [vmem:[#allocation3 + $0x58] sm:$0xff]
      %v1201 = vld [vmem:[#allocation3 + $0x60] sm:$0xff]
      %v1202 = vld [vmem:[#allocation3 + $0x68] sm:$0xff]
      %v1203 = vld [vmem:[#allocation3 + $0x70] sm:$0xff]
      %v1204 = vld [vmem:[#allocation3 + $0x78] sm:$0xff]
      %v1205 = vld [vmem:[#allocation3 + $0x80] sm:$0xff]
      %v1206 = vld [vmem:[#allocation3 + $0x88] sm:$0xff]
      %v1207 = vld [vmem:[%s2 + $0x18] sm:$0xff]
      %v1208 = vld [vmem:[%s2 + $0x20] sm:$0xff]
      %1210 = vset.pattern.permute.xlu0 0
      %1211 = vperm.xlu0 %1210, %v1207
      %v1212 = vpop.permute.xlu0 %1211
      %1215 = vset.pattern.permute.xlu0 0
      %1216 = vperm.xlu0 %1215, %v1208
      %v1217 = vpop.permute.xlu0 %1216
      %v1220 = vsel %vm742, %v1187, 0
      %v1223 = vsel %vm742, %v1188, 0
      %1225 = vmatprep.subr.mxu0 %v1190
      %1226 = vmatpush1.msra.mxu0 %v1189
      %1227 = vmatprep.subr.mxu0 %v1192
      %1228 = vmatpush1.msra.mxu0 %v1191
      %1229 = vmatprep.subr.mxu0 %v1194
      %1230 = vmatpush1.msra.mxu0 %v1193
      %1231 = vmatprep.subr.mxu0 %v1196
      %1232 = vmatpush1.msra.mxu0 %v1195
      %1233 = vmatprep.subr.mxu0 %v1198
      %1234 = vmatpush1.msra.mxu0 %v1197
      %1235 = vmatprep.subr.mxu0 %v1200
      %1236 = vmatpush1.msra.mxu0 %v1199
      %1237 = vmatprep.subr.mxu0 %v1202
      %1238 = vmatpush1.msra.mxu0 %v1201
      %1239 = vmatprep.subr.mxu0 %v1204
      %1240 = vmatpush1.msra.mxu0 %v1203
      %1241 = vmatprep.subr.mxu0 %v1206
      %1242 = vmatpush1.msra.mxu0 %v1205
      %1243 = vmatprep.subr.mxu0 0.0
      %1244 = vmatpush1.msra.mxu0 0.0
      %1245 = vmatprep.subr.mxu0 0.0
      %1246 = vmatpush1.msra.mxu0 0.0
      %1247 = vmatprep.subr.mxu0 0.0
      %1248 = vmatpush1.msra.mxu0 0.0
      %1249 = vmatprep.subr.mxu0 0.0
      %1250 = vmatpush1.msra.mxu0 0.0
      %1251 = vmatprep.subr.mxu0 0.0
      %1252 = vmatpush1.msra.mxu0 0.0
      %1253 = vmatprep.subr.mxu0 0.0
      %1254 = vmatpush1.msra.mxu0 0.0
      %1255 = vmatprep.subr.mxu0 0.0
      %1256 = vmatpush1.msra.mxu0 0.0
      %1257 = vmatprep.subr.mxu0 0.0
      %1258 = vmatpush1.msra.mxu0 0.0
      %1259 = vmatprep.subr.mxu0 0.0
      %1260 = vmatpush1.msra.mxu0 0.0
      %1261 = vmatprep.subr.mxu0 0.0
      %1262 = vmatpush1.msra.mxu0 0.0
      %1263 = vmatprep.subr.mxu0 0.0
      %1264 = vmatpush1.msra.mxu0 0.0
      %1265 = vmatprep.subr.mxu0 0.0
      %1266 = vmatpush1.msra.mxu0 0.0
      %1267 = vmatprep.subr.mxu0 0.0
      %1268 = vmatpush1.msra.mxu0 0.0
      %1269 = vmatprep.subr.mxu0 0.0
      %1270 = vmatpush1.msra.mxu0 0.0
      %1271 = vmatprep.subr.mxu0 0.0
      %1272 = vmatpush1.msra.mxu0 0.0
      %1273 = vmatprep.subr.mxu0 0.0
      %1274 = vmatpush1.msra.mxu0 0.0
      %1275 = vmatprep.subr.mxu0 0.0
      %1276 = vmatpush1.msra.mxu0 0.0
      %1277 = vmatprep.subr.mxu0 0.0
      %1278 = vmatpush1.msra.mxu0 0.0
      %1279 = vmatprep.subr.mxu0 0.0
      %1280 = vmatpush1.msra.mxu0 0.0
      %1281 = vmatprep.subr.mxu0 0.0
      %1282 = vmatpush1.msra.mxu0 0.0
      %1283 = vmatprep.subr.mxu0 0.0
      %1284 = vmatpush1.msra.mxu0 0.0
      %1285 = vmatprep.subr.mxu0 0.0
      %1286 = vmatpush1.msra.mxu0 0.0
      %1287 = vmatprep.subr.mxu0 0.0
      %1288 = vmatpush1.msra.mxu0 0.0
      %1289 = vmatprep.mubr.f32.mxu0 0.0
      %1290 = vmatmul.mubr.f32.gmra.mrb[0].mxu0 %v1220
      %v1291 = vpop.f32.mrb[0].mxu0
      %v1292 = vadd.f32 %v1212, %v1291
      %v1293 = vpop.f32.mrb[0].mxu0
      %v1294 = vadd.f32 %v1212, %v1293
      %1295 = vmatprep.mubr.f32.mxu0 0.0
      %1296 = vmatmul.mubr.f32.gmra.mrb[0].mxu0 %v1223
      %v1297 = vpop.f32.mrb[0].mxu0
      %v1298 = vadd.f32 %v1217, %v1297
      %v1299 = vpop.f32.mrb[0].mxu0
      %v1300 = vadd.f32 %v1217, %v1299
      %1301 = vdwg.mxu0
      %v1302 = vadd.f32 %v1185, %v1292
      %v1303 = vadd.f32 %v1186, %v1294
      %v1304 = vadd.f32 %v1185, %v1298
      %v1305 = vadd.f32 %v1186, %v1300
      %v1306 = vadd.f32 %v837, %v1302
      %v1307 = vadd.f32 %v838, %v1303
      %1308 = vst [vmem:[#allocation2 + $0x8] sm:$0xff] %v1306
      %1309 = vst [vmem:[#allocation2 + $0x10] sm:$0xff] %v1307
      %v1310 = vld [vmem:[#allocation2] sm:$0xff]
      %v1311 = vld [vmem:[#allocation2 + $0x8] sm:$0xff]
      %v1312 = vld [vmem:[#allocation2 + $0x10] sm:$0xff]
      %v1313 = vmul.f32 %v1310, %v276
      %v1314 = vmul.f32 %v1311, %v280
      %v1315 = vmul.f32 %v1312, %v278
      %v1316 = vmax.f32 %v1313, 0.0
      %v1317 = vmax.f32 %v1314, 0.0
      %v1318 = vmax.f32 %v1315, 0.0
      %1322 = vrot.lane.b32.xlu0 %v1316, 17
      %v1323 = vpop.permute.xlu0 %1322
      %1324 = vrot.lane.b32.xlu0 %v1317, 17
      %v1325 = vpop.permute.xlu0 %1324
      %1326 = vrot.lane.b32.xlu0 %v1318, 17
      %v1327 = vpop.permute.xlu0 %1326
      %v1328 = vsel %vm299, %v1323, %v1325
      %v1329 = vsel %vm299, %v1325, %v1327
      %1332 = vst [vmem:[#allocation3] sm:$0xff] %v1328
      %1333 = vst [vmem:[#allocation3 + $0x8] sm:$0xff] %v1329
      %v1334 = vld [vmem:[#allocation2] sm:$0xff]
      %v1335 = vld [vmem:[#allocation2 + $0x8] sm:$0xff]
      %v1336 = vld [vmem:[#allocation2 + $0x10] sm:$0xff]
      %1340 = vrot.lane.b32.xlu0 %v1334, 127
      %v1341 = vpop.permute.xlu0 %1340
      %1342 = vrot.lane.b32.xlu0 %v1335, 127
      %v1343 = vpop.permute.xlu0 %1342
      %1344 = vrot.lane.b32.xlu0 %v1336, 127
      %v1345 = vpop.permute.xlu0 %1344
      %v1346 = vsel %vm318, %v1341, %v1343
      %v1347 = vsel %vm318, %v1343, %v1345
      %v1351 = vadd.f32 %v1313, %v1346
      %v1352 = vadd.f32 %v1314, %v1347
      %v1353 = vadd.f32 %v1315, %v1345
      %v1354 = vmax.f32 %v1334, 0.0
      %v1355 = vmax.f32 %v1335, 0.0
      %v1356 = vmax.f32 %v1336, 0.0
      %1360 = vrot.lane.b32.xlu0 %v1354, 16
      %v1361 = vpop.permute.xlu0 %1360
      %1362 = vrot.lane.b32.xlu0 %v1355, 16
      %v1363 = vpop.permute.xlu0 %1362
      %1364 = vrot.lane.b32.xlu0 %v1356, 16
      %v1365 = vpop.permute.xlu0 %1364
      %v1366 = vsel %vm339, %v1361, %v1363
      %v1367 = vsel %vm339, %v1363, %v1365
      %1370 = vst [vmem:[#allocation3 + $0x10] sm:$0xff] %v1366
      %1371 = vst [vmem:[#allocation3 + $0x18] sm:$0xff] %v1367
      %v1372 = vld [vmem:[#allocation2] sm:$0xff]
      %v1373 = vld [vmem:[#allocation2 + $0x8] sm:$0xff]
      %v1374 = vld [vmem:[#allocation2 + $0x10] sm:$0xff]
      %v1375 = vmul.f32 %v1372, %v359
      %v1376 = vmul.f32 %v1373, %v363
      %v1377 = vmul.f32 %v1374, %v361
      %1381 = vrot.lane.b32.xlu0 %v1375, 126
      %v1382 = vpop.permute.xlu0 %1381
      %1383 = vrot.lane.b32.xlu0 %v1376, 126
      %v1384 = vpop.permute.xlu0 %1383
      %1385 = vrot.lane.b32.xlu0 %v1377, 126
      %v1386 = vpop.permute.xlu0 %1385
      %v1387 = vsel %vm379, %v1382, %v1384
      %v1388 = vsel %vm379, %v1384, %v1386
      %v1392 = vadd.f32 %v1351, %v1387
      %v1393 = vadd.f32 %v1352, %v1388
      %v1394 = vadd.f32 %v1353, %v1386
      %v1395 = vmax.f32 %v1375, 0.0
      %v1396 = vmax.f32 %v1376, 0.0
      %v1397 = vmax.f32 %v1377, 0.0
      %1401 = vrot.lane.b32.xlu0 %v1395, 15
      %v1402 = vpop.permute.xlu0 %1401
      %1403 = vrot.lane.b32.xlu0 %v1396, 15
      %v1404 = vpop.permute.xlu0 %1403
      %1405 = vrot.lane.b32.xlu0 %v1397, 15
      %v1406 = vpop.permute.xlu0 %1405
      %v1407 = vsel %vm400, %v1402, %v1404
      %v1408 = vsel %vm400, %v1404, %v1406
      %1411 = vst [vmem:[#allocation3 + $0x20] sm:$0xff] %v1407
      %1412 = vst [vmem:[#allocation3 + $0x28] sm:$0xff] %v1408
      %v1413 = vld [vmem:[#allocation2] sm:$0xff]
      %v1414 = vld [vmem:[#allocation2 + $0x8] sm:$0xff]
      %v1415 = vld [vmem:[#allocation2 + $0x10] sm:$0xff]
      %v1416 = vmul.f32 %v1413, %v411
      %v1417 = vmul.f32 %v1414, %v414
      %v1418 = vmul.f32 %v1415, %v413
      %1422 = vrot.lane.b32.xlu0 %v1416, 112
      %v1423 = vpop.permute.xlu0 %1422
      %1424 = vrot.lane.b32.xlu0 %v1417, 112
      %v1425 = vpop.permute.xlu0 %1424
      %1426 = vrot.lane.b32.xlu0 %v1418, 112
      %v1427 = vpop.permute.xlu0 %1426
      %v1428 = vsel %vm430, %v1423, %v1425
      %v1429 = vsel %vm430, %v1425, %v1427
      %v1433 = vadd.f32 %v1392, %v1428
      %v1434 = vadd.f32 %v1393, %v1429
      %v1435 = vadd.f32 %v1394, %v1427
      %v1436 = vmax.f32 %v1416, 0.0
      %v1437 = vmax.f32 %v1417, 0.0
      %v1438 = vmax.f32 %v1418, 0.0
      %1442 = vrot.lane.b32.xlu0 %v1436, 1
      %v1443 = vpop.permute.xlu0 %1442
      %1444 = vrot.lane.b32.xlu0 %v1437, 1
      %v1445 = vpop.permute.xlu0 %1444
      %1446 = vrot.lane.b32.xlu0 %v1438, 1
      %v1447 = vpop.permute.xlu0 %1446
      %v1448 = vsel %vm451, %v1443, %v1445
      %v1449 = vsel %vm451, %v1445, %v1447
      %1452 = vst [vmem:[#allocation3 + $0x30] sm:$0xff] %v1448
      %1453 = vst [vmem:[#allocation3 + $0x38] sm:$0xff] %v1449
      %v1454 = vld [vmem:[#allocation2 + $0x8] sm:$0xff]
      %v1455 = vld [vmem:[#allocation2 + $0x10] sm:$0xff]
      %1458 = vrot.lane.b32.xlu0 %v1454, 111
      %v1459 = vpop.permute.xlu0 %1458
      %1460 = vrot.lane.b32.xlu0 %v1455, 111
      %v1461 = vpop.permute.xlu0 %1460
      %v1462 = vsel %vm279, %v1459, %v1461
      %v1466 = vadd.f32 %v1433, %v1459
      %v1467 = vadd.f32 %v1434, %v1462
      %v1468 = vadd.f32 %v1435, %v1461
      %v1469 = vmax.f32 %v1454, 0.0
      %v1470 = vmax.f32 %v1455, 0.0
      %1471 = vst [vmem:[#allocation3 + $0x40] sm:$0xff] %v1469
      %1472 = vst [vmem:[#allocation3 + $0x48] sm:$0xff] %v1470
      %v1473 = vld [vmem:[#allocation2 + $0x8] sm:$0xff]
      %v1474 = vld [vmem:[#allocation2 + $0x10] sm:$0xff]
      %v1475 = vld [vmem:[#allocation2 + $0x18] sm:$0xff]
      %v1476 = vmul.f32 %v1473, %v481
      %v1477 = vmul.f32 %v1474, %v484
      %v1478 = vmul.f32 %v1475, %v483
      %1482 = vrot.lane.b32.xlu0 %v1476, 110
      %v1483 = vpop.permute.xlu0 %1482
      %1484 = vrot.lane.b32.xlu0 %v1477, 110
      %v1485 = vpop.permute.xlu0 %1484
      %1486 = vrot.lane.b32.xlu0 %v1478, 110
      %v1487 = vpop.permute.xlu0 %1486
      %v1488 = vsel %vm500, %v1483, %v1485
      %v1489 = vsel %vm500, %v1485, %v1487
      %v1493 = vadd.f32 %v1466, %v1483
      %v1494 = vadd.f32 %v1467, %v1488
      %v1495 = vadd.f32 %v1468, %v1489
      %v1496 = vmax.f32 %v1476, 0.0
      %v1497 = vmax.f32 %v1477, 0.0
      %v1498 = vmax.f32 %v1478, 0.0
      %1502 = vrot.lane.b32.xlu0 %v1496, 127
      %v1503 = vpop.permute.xlu0 %1502
      %1504 = vrot.lane.b32.xlu0 %v1497, 127
      %v1505 = vpop.permute.xlu0 %1504
      %1506 = vrot.lane.b32.xlu0 %v1498, 127
      %v1507 = vpop.permute.xlu0 %1506
      %v1508 = vsel %vm318, %v1503, %v1505
      %v1509 = vsel %vm318, %v1505, %v1507
      %1512 = vst [vmem:[#allocation3 + $0x50] sm:$0xff] %v1508
      %1513 = vst [vmem:[#allocation3 + $0x58] sm:$0xff] %v1509
      %v1514 = vld [vmem:[#allocation2 + $0x8] sm:$0xff]
      %v1515 = vld [vmem:[#allocation2 + $0x10] sm:$0xff]
      %v1516 = vld [vmem:[#allocation2 + $0x18] sm:$0xff]
      %v1517 = vmul.f32 %v1514, %v531
      %v1518 = vmul.f32 %v1515, %v534
      %v1519 = vmul.f32 %v1516, %v533
      %1523 = vrot.lane.b32.xlu0 %v1517, 96
      %v1524 = vpop.permute.xlu0 %1523
      %1525 = vrot.lane.b32.xlu0 %v1518, 96
      %v1526 = vpop.permute.xlu0 %1525
      %1527 = vrot.lane.b32.xlu0 %v1519, 96
      %v1528 = vpop.permute.xlu0 %1527
      %v1529 = vsel %vm550, %v1524, %v1526
      %v1530 = vsel %vm550, %v1526, %v1528
      %v1534 = vadd.f32 %v1493, %v1524
      %v1535 = vadd.f32 %v1494, %v1529
      %v1536 = vadd.f32 %v1495, %v1530
      %v1537 = vmax.f32 %v1517, 0.0
      %v1538 = vmax.f32 %v1518, 0.0
      %v1539 = vmax.f32 %v1519, 0.0
      %1543 = vrot.lane.b32.xlu0 %v1537, 113
      %v1544 = vpop.permute.xlu0 %1543
      %1545 = vrot.lane.b32.xlu0 %v1538, 113
      %v1546 = vpop.permute.xlu0 %1545
      %1547 = vrot.lane.b32.xlu0 %v1539, 113
      %v1548 = vpop.permute.xlu0 %1547
      %v1549 = vsel %vm362, %v1544, %v1546
      %v1550 = vsel %vm362, %v1546, %v1548
      %1553 = vst [vmem:[#allocation3 + $0x60] sm:$0xff] %v1549
      %1554 = vst [vmem:[#allocation3 + $0x68] sm:$0xff] %v1550
      %v1555 = vld [vmem:[#allocation2 + $0x8] sm:$0xff]
      %v1556 = vld [vmem:[#allocation2 + $0x10] sm:$0xff]
      %v1557 = vld [vmem:[#allocation2 + $0x18] sm:$0xff]
      %1561 = vrot.lane.b32.xlu0 %v1555, 95
      %v1562 = vpop.permute.xlu0 %1561
      %1563 = vrot.lane.b32.xlu0 %v1556, 95
      %v1564 = vpop.permute.xlu0 %1563
      %1565 = vrot.lane.b32.xlu0 %v1557, 95
      %v1566 = vpop.permute.xlu0 %1565
      %v1567 = vsel %vm589, %v1562, %v1564
      %v1568 = vsel %vm589, %v1564, %v1566
      %v1572 = vadd.f32 %v1534, %v1562
      %v1573 = vadd.f32 %v1535, %v1567
      %v1574 = vadd.f32 %v1536, %v1568
      %v1575 = vmax.f32 %v1555, 0.0
      %v1576 = vmax.f32 %v1556, 0.0
      %v1577 = vmax.f32 %v1557, 0.0
      %1581 = vrot.lane.b32.xlu0 %v1575, 112
      %v1582 = vpop.permute.xlu0 %1581
      %1583 = vrot.lane.b32.xlu0 %v1576, 112
      %v1584 = vpop.permute.xlu0 %1583
      %1585 = vrot.lane.b32.xlu0 %v1577, 112
      %v1586 = vpop.permute.xlu0 %1585
      %v1587 = vsel %vm430, %v1582, %v1584
      %v1588 = vsel %vm430, %v1584, %v1586
      %1591 = vst [vmem:[#allocation3 + $0x70] sm:$0xff] %v1587
      %1592 = vst [vmem:[#allocation3 + $0x78] sm:$0xff] %v1588
      %v1593 = vld [vmem:[#allocation2 + $0x8] sm:$0xff]
      %v1594 = vld [vmem:[#allocation2 + $0x10] sm:$0xff]
      %v1595 = vld [vmem:[#allocation2 + $0x18] sm:$0xff]
      %v1596 = vmul.f32 %v1593, %v620
      %v1597 = vmul.f32 %v1594, %v623
      %v1598 = vmul.f32 %v1595, %v622
      %1602 = vrot.lane.b32.xlu0 %v1596, 94
      %v1603 = vpop.permute.xlu0 %1602
      %1604 = vrot.lane.b32.xlu0 %v1597, 94
      %v1605 = vpop.permute.xlu0 %1604
      %1606 = vrot.lane.b32.xlu0 %v1598, 94
      %v1607 = vpop.permute.xlu0 %1606
      %v1608 = vsel %vm639, %v1603, %v1605
      %v1609 = vsel %vm639, %v1605, %v1607
      %v1613 = vadd.f32 %v1572, %v1603
      %v1614 = vadd.f32 %v1573, %v1608
      %v1615 = vadd.f32 %v1574, %v1609
      %v1616 = vmax.f32 %v1596, 0.0
      %v1617 = vmax.f32 %v1597, 0.0
      %v1618 = vmax.f32 %v1598, 0.0
      %1622 = vrot.lane.b32.xlu0 %v1616, 111
      %v1623 = vpop.permute.xlu0 %1622
      %1624 = vrot.lane.b32.xlu0 %v1617, 111
      %v1625 = vpop.permute.xlu0 %1624
      %1626 = vrot.lane.b32.xlu0 %v1618, 111
      %v1627 = vpop.permute.xlu0 %1626
      %v1628 = vsel %vm279, %v1623, %v1625
      %v1629 = vsel %vm279, %v1625, %v1627
      %1632 = vst [vmem:[#allocation3 + $0x80] sm:$0xff] %v1628
      %1633 = vst [vmem:[#allocation3 + $0x88] sm:$0xff] %v1629
      %v1634 = vmul.f32 %v1306, 0.2
      %v1635 = vmul.f32 %v1307, 0.2
      %v1636 = vmul.f32 %v1613, %v678
      %v1637 = vmul.f32 %v1614, %v681
      %v1638 = vmul.f32 %v1615, %v680
      %1642 = vrot.lane.b32.xlu0 %v1636, 17
      %v1643 = vpop.permute.xlu0 %1642
      %1644 = vrot.lane.b32.xlu0 %v1637, 17
      %v1645 = vpop.permute.xlu0 %1644
      %1646 = vrot.lane.b32.xlu0 %v1638, 17
      %v1647 = vpop.permute.xlu0 %1646
      %v1648 = vsel %vm299, %v1643, %v1645
      %v1649 = vsel %vm299, %v1645, %v1647
      %v1652 = vadd.f32 %v1634, %v1648
      %v1653 = vadd.f32 %v1635, %v1649
      %v1654 = vld [vmem:[%s1 + $0x28] sm:$0xff]
      %v1655 = vld [vmem:[#allocation3] sm:$0xff]
      %v1656 = vld [vmem:[#allocation3 + $0x8] sm:$0xff]
      %v1657 = vld [vmem:[#allocation3 + $0x10] sm:$0xff]
      %v1658 = vld [vmem:[#allocation3 + $0x18] sm:$0xff]
      %v1659 = vld [vmem:[#allocation3 + $0x20] sm:$0xff]
      %v1660 = vld [vmem:[#allocation3 + $0x28] sm:$0xff]
      %v1661 = vld [vmem:[#allocation3 + $0x30] sm:$0xff]
      %v1662 = vld [vmem:[#allocation3 + $0x38] sm:$0xff]
      %v1663 = vld [vmem:[#allocation3 + $0x40] sm:$0xff]
      %v1664 = vld [vmem:[#allocation3 + $0x48] sm:$0xff]
      %v1665 = vld [vmem:[#allocation3 + $0x50] sm:$0xff]
      %v1666 = vld [vmem:[#allocation3 + $0x58] sm:$0xff]
      %v1667 = vld [vmem:[#allocation3 + $0x60] sm:$0xff]
      %v1668 = vld [vmem:[#allocation3 + $0x68] sm:$0xff]
      %v1669 = vld [vmem:[#allocation3 + $0x70] sm:$0xff]
      %v1670 = vld [vmem:[#allocation3 + $0x78] sm:$0xff]
      %v1671 = vld [vmem:[#allocation3 + $0x80] sm:$0xff]
      %v1672 = vld [vmem:[#allocation3 + $0x88] sm:$0xff]
      %v1673 = vld [vmem:[%s2 + $0x28] sm:$0xff]
      %1675 = vset.pattern.permute.xlu0 0
      %1676 = vperm.xlu0 %1675, %v1673
      %v1677 = vpop.permute.xlu0 %1676
      %v1680 = vsel %vm742, %v1654, 0
      %1682 = vmatprep.subr.mxu0 %v1656
      %1683 = vmatpush1.msra.mxu0 %v1655
      %1684 = vmatprep.subr.mxu0 %v1658
      %1685 = vmatpush1.msra.mxu0 %v1657
      %1686 = vmatprep.subr.mxu0 %v1660
      %1687 = vmatpush1.msra.mxu0 %v1659
      %1688 = vmatprep.subr.mxu0 %v1662
      %1689 = vmatpush1.msra.mxu0 %v1661
      %1690 = vmatprep.subr.mxu0 %v1664
      %1691 = vmatpush1.msra.mxu0 %v1663
      %1692 = vmatprep.subr.mxu0 %v1666
      %1693 = vmatpush1.msra.mxu0 %v1665
      %1694 = vmatprep.subr.mxu0 %v1668
      %1695 = vmatpush1.msra.mxu0 %v1667
      %1696 = vmatprep.subr.mxu0 %v1670
      %1697 = vmatpush1.msra.mxu0 %v1669
      %1698 = vmatprep.subr.mxu0 %v1672
      %1699 = vmatpush1.msra.mxu0 %v1671
      %1700 = vmatprep.subr.mxu0 0.0
      %1701 = vmatpush1.msra.mxu0 0.0
      %1702 = vmatprep.subr.mxu0 0.0
      %1703 = vmatpush1.msra.mxu0 0.0
      %1704 = vmatprep.subr.mxu0 0.0
      %1705 = vmatpush1.msra.mxu0 0.0
      %1706 = vmatprep.subr.mxu0 0.0
      %1707 = vmatpush1.msra.mxu0 0.0
      %1708 = vmatprep.subr.mxu0 0.0
      %1709 = vmatpush1.msra.mxu0 0.0
      %1710 = vmatprep.subr.mxu0 0.0
      %1711 = vmatpush1.msra.mxu0 0.0
      %1712 = vmatprep.subr.mxu0 0.0
      %1713 = vmatpush1.msra.mxu0 0.0
      %1714 = vmatprep.subr.mxu0 0.0
      %1715 = vmatpush1.msra.mxu0 0.0
      %1716 = vmatprep.subr.mxu0 0.0
      %1717 = vmatpush1.msra.mxu0 0.0
      %1718 = vmatprep.subr.mxu0 0.0
      %1719 = vmatpush1.msra.mxu0 0.0
      %1720 = vmatprep.subr.mxu0 0.0
      %1721 = vmatpush1.msra.mxu0 0.0
      %1722 = vmatprep.subr.mxu0 0.0
      %1723 = vmatpush1.msra.mxu0 0.0
      %1724 = vmatprep.subr.mxu0 0.0
      %1725 = vmatpush1.msra.mxu0 0.0
      %1726 = vmatprep.subr.mxu0 0.0
      %1727 = vmatpush1.msra.mxu0 0.0
      %1728 = vmatprep.subr.mxu0 0.0
      %1729 = vmatpush1.msra.mxu0 0.0
      %1730 = vmatprep.subr.mxu0 0.0
      %1731 = vmatpush1.msra.mxu0 0.0
      %1732 = vmatprep.subr.mxu0 0.0
      %1733 = vmatpush1.msra.mxu0 0.0
      %1734 = vmatprep.subr.mxu0 0.0
      %1735 = vmatpush1.msra.mxu0 0.0
      %1736 = vmatprep.subr.mxu0 0.0
      %1737 = vmatpush1.msra.mxu0 0.0
      %1738 = vmatprep.subr.mxu0 0.0
      %1739 = vmatpush1.msra.mxu0 0.0
      %1740 = vmatprep.subr.mxu0 0.0
      %1741 = vmatpush1.msra.mxu0 0.0
      %1742 = vmatprep.subr.mxu0 0.0
      %1743 = vmatpush1.msra.mxu0 0.0
      %1744 = vmatprep.subr.mxu0 0.0
      %1745 = vmatpush1.msra.mxu0 0.0
      %1746 = vmatprep.mubr.f32.mxu0 0.0
      %1747 = vmatmul.mubr.f32.gmra.mrb[0].mxu0 %v1680
      %v1748 = vpop.f32.mrb[0].mxu0
      %v1749 = vadd.f32 %v1677, %v1748
      %v1750 = vpop.f32.mrb[0].mxu0
      %v1751 = vadd.f32 %v1677, %v1750
      %1752 = vdwg.mxu0
      %v1753 = vadd.f32 %v1652, %v1749
      %v1754 = vadd.f32 %v1653, %v1751
      %v1755 = vadd.f32 %v839, %v1304
      %v1756 = vadd.f32 %v840, %v1305
      %v1757 = vadd.f32 %v1755, %v1753
      %v1758 = vadd.f32 %v1756, %v1754
      %1759 = vst [vmem:[%s251] sm:$0xff] %v1757
      %1760 = vst [vmem:[%s251 + $0x8] sm:$0xff] %v1758
      %p1761 = scmp.lt.s32.totalorder %s17, 1
      %s1762 = scalar_select %p1761, %s17, 1
      %s1763 = smul.addr %s1762, 2
      %s1764 = smul.addr %s1763, 8
      %s1765 = scalar_lea.vmem %s6, %s1764
      // Predicated region
      $region45: #{cell_forward.1} parent=43 // pred_check
        %p1766 = pneg %p166
      $region46: #{cell_forward.1} parent=43 // pred_check_branch
        %1768 = sbr.rel (%p1766) target = $region48
      $region47: #{cell_forward.1} parent=43 // pred_region
        _
      $region48: #{cell_forward.1} parent=43 // pred_fallthru
        _
    $region44: #{cell_forward.1} parent=5 // pred_fallthru
      _
    %p1769 = scmp.le.s32.totalorder 2, %s12
    // Predicated region
    $region49: #{cell_forward.1} parent=5 // pred_check
      %p1770 = pneg %p1769
    $region50: #{cell_forward.1} parent=5 // pred_check_branch
      %1772 = sbr.rel (%p1770) target = $region52
    $region51: #{cell_forward.1} parent=5 // pred_region
      %s1773 = ssub.s32 %s12, 2
      // Predicated region
      $region53: #{cell_forward.1} parent=51 // pred_check
        %p1774 = pneg %p172
      $region54: #{cell_forward.1} parent=51 // pred_check_branch
        %1776 = sbr.rel (%p1774) target = $region56
      $region55: #{cell_forward.1} parent=51 // pred_region
        %p1777 = scmp.lt.s32.totalorder %s18, 1
        %s1778 = scalar_select %p1777, %s18, 1
        %s1779 = smul.addr %s1778, 2
        %s1780 = smul.addr %s1779, 8
        %s1781 = scalar_lea.vmem %s6, %s1780
      $region56: #{cell_forward.1} parent=51 // pred_fallthru
        _
    $region52: #{cell_forward.1} parent=5 // pred_fallthru
      _
  $region6: #{cell_forward.1} parent=0 // loop_footer
    %s16 = sadd.s32 1, %s12
  $region7: #{cell_forward.1} parent=0 // loop_footer_branch
    %11 = sbr.rel target = $region3
  $region8: #{cell_forward.1} parent=0 // loop_exit
    _

</llo_original>
